<compile_context>
chip_gen: v7x
topology: tpu7x:2x2x1
jax: 0.10.0
libtpu: 0.0.40
codegen_flags: <defaults>
</compile_context>

<pallas_src>
import functools

import jax
import jax.numpy as jnp
import numpy as np
from jax import lax
from jax.experimental import pallas as pl
from jax.experimental.pallas import tpu as pltpu

_LANES = 128  # slab width (one vreg lane dimension)


def _lstm1d_kernel(xt_ref, p_ref, out_ref, *, seq, cnn_flat, input_dim,
                   hidden_dim, width):
    S, CD, D, H, W = seq, cnn_flat, input_dim, hidden_dim, width
    f32 = jnp.float32

    # Row offsets inside the packed parameter slab (all 8-row aligned).
    r_whh = W
    r_misc = W + H
    r_fcw = r_misc + 8

    # Static slices of the single parameter slab (views; no per-step cost).
    w_comb = p_ref[0:W, :]                    # (W, W) rows 0:CD conv⊗W_ih, CD:CD+D 0.002*W_ih
    whh = p_ref[r_whh:r_whh + H, :]           # (H, W) W_hh^T (g columns pre-scaled x2)
    beff = p_ref[r_misc + 0:r_misc + 1, :]    # (1, W) fused bias (g columns x2)
    t2v_w = p_ref[r_misc + 1:r_misc + 2, :]   # (1, W) Time2Vec w at lanes CD:CD+D
    t2v_b = p_ref[r_misc + 2:r_misc + 3, :]   # (1, W) Time2Vec b at lanes CD:CD+D
    fcb = p_ref[r_misc + 3:r_misc + 4, :]     # (1, W) fc bias at lanes 0:O
    fcw = p_ref[r_fcw:r_fcw + H, :]           # (H, W) fc weight^T at lanes 0:O

    xt = xt_ref[...]                          # (S, W): x_flat | t2v zone | ... | times

    # --- Prologue (S-parallel, one shot) -------------------------------------
    times = xt[:, W - 1:W]                    # (S, 1)
    lin = times * t2v_w + t2v_b               # (S, W); nonzero only in t2v lanes
    col = lax.broadcasted_iota(jnp.int32, (S, W), 1)
    # SineActivation: sin on the first D-1 t2v lanes, linear on the last one.
    t2v = jnp.where(col == CD + D - 1, lin, jnp.sin(lin))

    # Single lane-dense MXU matmul; conv fold, 0.002*t2v fold and the g-gate
    # x2 scale all live in w_comb / beff (host-side, exact).
    xproj = jnp.dot(xt + t2v, w_comb, preferred_element_type=f32) + beff   # (S, W)

    # --- Sequential LSTM recurrence (fully unrolled; S static & small) --------
    h = jnp.zeros((1, H), f32)
    c = jnp.zeros((1, H), f32)
    hs_rows = []
    for t in range(S):  # Python unroll: static slices, full scheduler visibility
        gates = xproj[t:t + 1, :] + jnp.dot(h, whh, preferred_element_type=f32)
        s_all = jax.nn.sigmoid(gates)                  # one EUP push per step
        i_g = s_all[:, 0:H]                            # PyTorch gate order: i, f, g, o
        f_g = s_all[:, H:2 * H]
        g_g = 2.0 * s_all[:, 2 * H:3 * H] - 1.0        # tanh via pre-scaled g columns
        o_g = s_all[:, 3 * H:4 * H]
        c = f_g * c + i_g * g_g
        h = o_g * jnp.tanh(c)
        hs_rows.append(h)                              # stays in vregs (no VMEM store)
    hs = jnp.concatenate(hs_rows, axis=0)              # (S, H): one vreg at S=8, H=32

    # --- Epilogue: lane-dense (S, W) output slab (lanes >= O are zero) --------
    out_ref[...] = jnp.dot(hs, fcw, preferred_element_type=f32) + fcb


def pack_lstm1d_param_slab(params, cnn_dim, input_dim, hidden_dim, output_dim):
    """One-time host-side packing of all weights into a single lane-dense slab."""
    C, D, H, O = cnn_dim, input_dim, hidden_dim, output_dim
    CD = C * D
    W = _LANES
    f32 = jnp.float32

    assert 4 * H <= W and H % 8 == 0
    assert CD + D <= W - 1            # lane W-1 is reserved for `times`
    assert O <= W

    wih_t = params["wih_t"].astype(f32)                 # (D, 4H)
    conv_w = params["conv_w"].astype(f32)               # (C,)

    # tanh(x) = 2*sigmoid(2x) - 1: scale g-gate (2H:3H) pre-activation by 2 (exact in f32).
    col_scale = jnp.ones((1, W), f32).at[:, 2 * H:3 * H].set(2.0)

    # Combined input projection: 1x1 conv fold (rows 0:CD) + 0.002*t2v fold (rows CD:CD+D).
    w_comb = jnp.zeros((W, W), f32)
    w_comb = w_comb.at[:CD, :4 * H].set(
        (conv_w[:, None, None] * wih_t[None, :, :]).reshape(CD, 4 * H))
    w_comb = w_comb.at[CD:CD + D, :4 * H].set(0.002 * wih_t)
    w_comb = w_comb * col_scale

    whh_pad = jnp.zeros((H, W), f32).at[:, :4 * H].set(
        params["whh_t"].astype(f32)) * col_scale

    beff = params["lstm_b"].astype(f32) + params["conv_b"][0].astype(f32) * jnp.sum(
        wih_t, axis=0, keepdims=True)                   # (1, 4H)
    beff_pad = jnp.zeros((1, W), f32).at[:, :4 * H].set(beff) * col_scale

    t2v_w_row = jnp.zeros((1, W), f32).at[:, CD:CD + D].set(params["t2v_w"].astype(f32))
    t2v_b_row = jnp.zeros((1, W), f32).at[:, CD:CD + D].set(params["t2v_b"].astype(f32))
    fcb_row = jnp.zeros((1, W), f32).at[:, :O].set(params["fcb"].astype(f32))
    fcw_pad = jnp.zeros((H, W), f32).at[:, :O].set(params["fcw_t"].astype(f32))

    misc = jnp.concatenate(
        [beff_pad, t2v_w_row, t2v_b_row, fcb_row, jnp.zeros((4, W), f32)], axis=0)  # (8, W)

    p_slab = jnp.concatenate([w_comb, whh_pad, misc, fcw_pad], axis=0)  # (W+H+8+H, W)
    assert p_slab.shape[0] % 8 == 0
    return p_slab


def lstm_1d_forward(params, inputs, times):
    """inputs: (S, cnn_dim, input_dim) float32; times: (S, 1) float32."""
    S, C, D = inputs.shape
    H = params["whh_t"].shape[0]
    O = params["fcb"].shape[-1]
    CD = C * D
    W = _LANES
    f32 = jnp.float32

    # NOTE: in production the param slab would be packed once and cached.
    p_slab = pack_lstm1d_param_slab(params, C, D, H, O)

    # Per-call data slab: x_flat in lanes 0:CD, times in lane W-1, zeros elsewhere.
    x_flat = inputs.astype(f32).reshape(S, CD)
    xt = jnp.zeros((S, W), f32)
    xt = xt.at[:, :CD].set(x_flat)
    xt = xt.at[:, W - 1:W].set(times.astype(f32).reshape(S, 1))

    kernel = functools.partial(
        _lstm1d_kernel, seq=S, cnn_flat=CD, input_dim=D, hidden_dim=H, width=W)

    vmem = pl.BlockSpec(memory_space=pltpu.MemorySpace.VMEM)

    # Single grid point: whole problem (<~150 KB) fits trivially in VMEM on
    # v5e/v6e/v7x; the recurrence is inherently sequential.
    out_pad = pl.pallas_call(
        kernel,
        out_shape=jax.ShapeDtypeStruct((S, W), f32),
        in_specs=[vmem, vmem],
        out_specs=vmem,
    )(xt, p_slab)

    out = out_pad[:, :O]
    return jax.nn.sigmoid(out), out   # sigmoid on O=4 floats done in the XLA wrapper


def init_params(key, cnn_dim, input_dim, hidden_dim, output_dim):
    ks = jax.random.split(key, 12)
    f32 = jnp.float32

    # Conv1d(cnn_dim, 1, 1): weight replaced by Weibull(scale=1, concentration=3)
    # sample, emulated deterministically via inverse-CDF transform.
    u = jax.random.uniform(ks[0], (cnn_dim,), dtype=f32, minval=1e-6, maxval=1.0)
    conv_w = (-jnp.log(u)) ** (1.0 / 3.0)
    conv_b = jax.random.uniform(ks[1], (1,), dtype=f32, minval=-0.5, maxval=0.5)

    # SineActivation(1, input_dim): w (1, D-1), b (D-1,), w0 (1, 1), b0 (1,).
    w = jax.random.normal(ks[2], (1, input_dim - 1), dtype=f32)
    b = jax.random.normal(ks[3], (1, input_dim - 1), dtype=f32)
    w0 = jax.random.normal(ks[4], (1, 1), dtype=f32)
    b0 = jax.random.normal(ks[5], (1, 1), dtype=f32)
    t2v_w = jnp.concatenate([w, w0], axis=1)     # (1, D): sine cols then linear col
    t2v_b = jnp.concatenate([b, b0], axis=1)

    # LSTM (single layer, unidirectional); PyTorch gate order i, f, g, o.
    k = 1.0 / np.sqrt(hidden_dim)
    wih = jax.random.uniform(ks[6], (4 * hidden_dim, input_dim), dtype=f32, minval=-k, maxval=k)
    whh = jax.random.uniform(ks[7], (4 * hidden_dim, hidden_dim), dtype=f32, minval=-k, maxval=k)
    bih = jax.random.uniform(ks[8], (4 * hidden_dim,), dtype=f32, minval=-k, maxval=k)
    bhh = jax.random.uniform(ks[9], (4 * hidden_dim,), dtype=f32, minval=-k, maxval=k)

    # fc: Linear(hidden_dim, output_dim)
    kf = 1.0 / np.sqrt(hidden_dim)
    fcw = jax.random.uniform(ks[10], (output_dim, hidden_dim), dtype=f32, minval=-kf, maxval=kf)
    fcb = jax.random.uniform(ks[11], (output_dim,), dtype=f32, minval=-kf, maxval=kf)

    return dict(
        conv_w=conv_w, conv_b=conv_b,
        t2v_w=t2v_w, t2v_b=t2v_b,
        wih_t=wih.T, whh_t=whh.T, lstm_b=(bih + bhh)[None, :],
        fcw_t=fcw.T, fcb=fcb[None, :],
    )


def reference_forward(params, inputs, times):
    """Pure-JAX reference of the PyTorch forward (layer_num=1, unidirectional)."""
    D = inputs.shape[-1]
    H = params["whh_t"].shape[0]
    conv = jnp.einsum("scd,c->sd", inputs, params["conv_w"]) + params["conv_b"][0]
    lin = times * params["t2v_w"] + params["t2v_b"]
    t2v = jnp.concatenate([jnp.sin(lin[:, :D - 1]), lin[:, D - 1:]], axis=1)
    feature = conv + 0.002 * t2v
    xproj = feature @ params["wih_t"] + params["lstm_b"][0]

    def step(carry, xp):
        h, c = carry
        gates = xp + h @ params["whh_t"]
        i = jax.nn.sigmoid(gates[0:H])
        f = jax.nn.sigmoid(gates[H:2 * H])
        g = jnp.tanh(gates[2 * H:3 * H])
        o = jax.nn.sigmoid(gates[3 * H:4 * H])
        c = f * c + i * g
        h = o * jnp.tanh(c)
        return (h, c), h

    (_, _), hs = lax.scan(step, (jnp.zeros(H), jnp.zeros(H)), xproj)
    out = hs @ params["fcw_t"] + params["fcb"][0]
    return jax.nn.sigmoid(out), out


if __name__ == "__main__":
    # seq, cnn_dim, input_dim, hidden_dim, output_dim
    S, C, D, H, O = 8, 4, 16, 32, 4

    key = jax.random.PRNGKey(0)
    kp, kx = jax.random.split(key, 2)
    params = init_params(kp, C, D, H, O)

    inputs = jax.random.normal(kx, (S, C, D), dtype=jnp.float32)   # NCL for Conv1d
    times = (jnp.arange(S, dtype=jnp.float32) / S).reshape(S, 1)

    sig, out = lstm_1d_forward(params, inputs, times)
    jax.block_until_ready((sig, out))

    ref_sig, ref_out = reference_forward(params, inputs, times)
    assert sig.shape == (S, O) and out.shape == (S, O)
    np.testing.assert_allclose(np.asarray(out), np.asarray(ref_out), rtol=1e-3, atol=1e-3)
    np.testing.assert_allclose(np.asarray(sig), np.asarray(ref_sig), rtol=1e-3, atol=1e-3)
    print("KERNEL_OK")
</pallas_src>

<mosaic_0001>
module attributes {stable_mosaic.version = 11 : i64} {
  func.func @_lstm1d_kernel(%arg0: memref<8x128xf32, #tpu.memory_space<vmem>>, %arg1: memref<200x128xf32, #tpu.memory_space<vmem>>, %arg2: memref<8x128xf32, #tpu.memory_space<vmem>>) attributes {dimension_semantics = [], scalar_prefetch = 0 : i64, scratch_operands = 0 : i64, tpu.core_type = #tpu.core_type<tc>} {
    %c0 = arith.constant 0 : index
    %c0_0 = arith.constant 0 : index
    %0 = vector.load %arg1[%c0, %c0_0] : memref<200x128xf32, #tpu.memory_space<vmem>>, vector<128x128xf32>
    %c128 = arith.constant 128 : index
    %c0_1 = arith.constant 0 : index
    %1 = vector.load %arg1[%c128, %c0_1] : memref<200x128xf32, #tpu.memory_space<vmem>>, vector<32x128xf32>
    %c160 = arith.constant 160 : index
    %c0_2 = arith.constant 0 : index
    %2 = vector.load %arg1[%c160, %c0_2] : memref<200x128xf32, #tpu.memory_space<vmem>>, vector<1x128xf32>
    %c161 = arith.constant 161 : index
    %c0_3 = arith.constant 0 : index
    %3 = vector.load %arg1[%c161, %c0_3] : memref<200x128xf32, #tpu.memory_space<vmem>>, vector<1x128xf32>
    %c162 = arith.constant 162 : index
    %c0_4 = arith.constant 0 : index
    %4 = vector.load %arg1[%c162, %c0_4] : memref<200x128xf32, #tpu.memory_space<vmem>>, vector<1x128xf32>
    %c163 = arith.constant 163 : index
    %c0_5 = arith.constant 0 : index
    %5 = vector.load %arg1[%c163, %c0_5] : memref<200x128xf32, #tpu.memory_space<vmem>>, vector<1x128xf32>
    %c168 = arith.constant 168 : index
    %c0_6 = arith.constant 0 : index
    %6 = vector.load %arg1[%c168, %c0_6] : memref<200x128xf32, #tpu.memory_space<vmem>>, vector<32x128xf32>
    %c0_7 = arith.constant 0 : index
    %c0_8 = arith.constant 0 : index
    %7 = vector.load %arg0[%c0_7, %c0_8] : memref<8x128xf32, #tpu.memory_space<vmem>>, vector<8x128xf32>
    %8 = vector.extract_strided_slice %7 {offsets = [0, 127], sizes = [8, 1], strides = [1, 1]} : vector<8x128xf32> to vector<8x1xf32>
    %9 = vector.broadcast %8 : vector<8x1xf32> to vector<8x128xf32>
    %10 = vector.broadcast %3 : vector<1x128xf32> to vector<8x128xf32>
    %11 = arith.mulf %9, %10 : vector<8x128xf32>
    %12 = vector.broadcast %4 : vector<1x128xf32> to vector<8x128xf32>
    %13 = arith.addf %11, %12 : vector<8x128xf32>
    %14 = tpu.iota {dimensions = array<i32: 1>} : vector<8x128xi32>
    %c79_i32 = arith.constant 79 : i32
    %15 = vector.broadcast %c79_i32 : i32 to vector<8x128xi32>
    %16 = arith.cmpi eq, %14, %15 : vector<8x128xi32>
    %17 = math.sin %13 : vector<8x128xf32>
    %18 = arith.select %16, %13, %17 : vector<8x128xi1>, vector<8x128xf32>
    %19 = arith.addf %7, %18 : vector<8x128xf32>
    %cst = arith.constant dense<0.000000e+00> : vector<8x128xf32>
    %20 = tpu.matmul %19, %0, %cst {dimension_numbers = #tpu.dot_dimension_numbers<[1], [0], [0], [1], [0, 0, 1, 1], [], []>} : vector<8x128xf32>, vector<128x128xf32>, vector<8x128xf32> -> vector<8x128xf32>
    %21 = vector.broadcast %2 : vector<1x128xf32> to vector<8x128xf32>
    %22 = arith.addf %20, %21 : vector<8x128xf32>
    %cst_9 = arith.constant 0.000000e+00 : f32
    %23 = vector.broadcast %cst_9 : f32 to vector<1x32xf32>
    %cst_10 = arith.constant 0.000000e+00 : f32
    %24 = vector.broadcast %cst_10 : f32 to vector<1x32xf32>
    %25 = vector.extract_strided_slice %22 {offsets = [0, 0], sizes = [1, 128], strides = [1, 1]} : vector<8x128xf32> to vector<1x128xf32>
    %cst_11 = arith.constant dense<0.000000e+00> : vector<1x128xf32>
    %26 = tpu.matmul %23, %1, %cst_11 {dimension_numbers = #tpu.dot_dimension_numbers<[1], [0], [0], [1], [0, 0, 1, 1], [], []>} : vector<1x32xf32>, vector<32x128xf32>, vector<1x128xf32> -> vector<1x128xf32>
    %27 = arith.addf %25, %26 : vector<1x128xf32>
    %28 = arith.negf %27 : vector<1x128xf32>
    %29 = math.exp %28 : vector<1x128xf32>
    %cst_12 = arith.constant 1.000000e+00 : f32
    %30 = vector.broadcast %cst_12 : f32 to vector<1x128xf32>
    %31 = arith.addf %30, %29 : vector<1x128xf32>
    %32 = arith.divf %30, %31 : vector<1x128xf32>
    %33 = vector.extract_strided_slice %32 {offsets = [0, 0], sizes = [1, 32], strides = [1, 1]} : vector<1x128xf32> to vector<1x32xf32>
    %34 = vector.extract_strided_slice %32 {offsets = [0, 32], sizes = [1, 32], strides = [1, 1]} : vector<1x128xf32> to vector<1x32xf32>
    %35 = vector.extract_strided_slice %32 {offsets = [0, 64], sizes = [1, 32], strides = [1, 1]} : vector<1x128xf32> to vector<1x32xf32>
    %cst_13 = arith.constant 2.000000e+00 : f32
    %36 = vector.broadcast %cst_13 : f32 to vector<1x32xf32>
    %37 = arith.mulf %36, %35 : vector<1x32xf32>
    %cst_14 = arith.constant 1.000000e+00 : f32
    %38 = vector.broadcast %cst_14 : f32 to vector<1x32xf32>
    %39 = arith.subf %37, %38 : vector<1x32xf32>
    %40 = vector.extract_strided_slice %32 {offsets = [0, 96], sizes = [1, 32], strides = [1, 1]} : vector<1x128xf32> to vector<1x32xf32>
    %41 = arith.mulf %34, %24 : vector<1x32xf32>
    %42 = arith.mulf %33, %39 : vector<1x32xf32>
    %43 = arith.addf %41, %42 : vector<1x32xf32>
    %44 = math.tanh %43 : vector<1x32xf32>
    %45 = arith.mulf %40, %44 : vector<1x32xf32>
    %46 = vector.extract_strided_slice %22 {offsets = [1, 0], sizes = [1, 128], strides = [1, 1]} : vector<8x128xf32> to vector<1x128xf32>
    %cst_15 = arith.constant dense<0.000000e+00> : vector<1x128xf32>
    %47 = tpu.matmul %45, %1, %cst_15 {dimension_numbers = #tpu.dot_dimension_numbers<[1], [0], [0], [1], [0, 0, 1, 1], [], []>} : vector<1x32xf32>, vector<32x128xf32>, vector<1x128xf32> -> vector<1x128xf32>
    %48 = arith.addf %46, %47 : vector<1x128xf32>
    %49 = arith.negf %48 : vector<1x128xf32>
    %50 = math.exp %49 : vector<1x128xf32>
    %cst_16 = arith.constant 1.000000e+00 : f32
    %51 = vector.broadcast %cst_16 : f32 to vector<1x128xf32>
    %52 = arith.addf %51, %50 : vector<1x128xf32>
    %53 = arith.divf %51, %52 : vector<1x128xf32>
    %54 = vector.extract_strided_slice %53 {offsets = [0, 0], sizes = [1, 32], strides = [1, 1]} : vector<1x128xf32> to vector<1x32xf32>
    %55 = vector.extract_strided_slice %53 {offsets = [0, 32], sizes = [1, 32], strides = [1, 1]} : vector<1x128xf32> to vector<1x32xf32>
    %56 = vector.extract_strided_slice %53 {offsets = [0, 64], sizes = [1, 32], strides = [1, 1]} : vector<1x128xf32> to vector<1x32xf32>
    %cst_17 = arith.constant 2.000000e+00 : f32
    %57 = vector.broadcast %cst_17 : f32 to vector<1x32xf32>
    %58 = arith.mulf %57, %56 : vector<1x32xf32>
    %cst_18 = arith.constant 1.000000e+00 : f32
    %59 = vector.broadcast %cst_18 : f32 to vector<1x32xf32>
    %60 = arith.subf %58, %59 : vector<1x32xf32>
    %61 = vector.extract_strided_slice %53 {offsets = [0, 96], sizes = [1, 32], strides = [1, 1]} : vector<1x128xf32> to vector<1x32xf32>
    %62 = arith.mulf %55, %43 : vector<1x32xf32>
    %63 = arith.mulf %54, %60 : vector<1x32xf32>
    %64 = arith.addf %62, %63 : vector<1x32xf32>
    %65 = math.tanh %64 : vector<1x32xf32>
    %66 = arith.mulf %61, %65 : vector<1x32xf32>
    %67 = vector.extract_strided_slice %22 {offsets = [2, 0], sizes = [1, 128], strides = [1, 1]} : vector<8x128xf32> to vector<1x128xf32>
    %cst_19 = arith.constant dense<0.000000e+00> : vector<1x128xf32>
    %68 = tpu.matmul %66, %1, %cst_19 {dimension_numbers = #tpu.dot_dimension_numbers<[1], [0], [0], [1], [0, 0, 1, 1], [], []>} : vector<1x32xf32>, vector<32x128xf32>, vector<1x128xf32> -> vector<1x128xf32>
    %69 = arith.addf %67, %68 : vector<1x128xf32>
    %70 = arith.negf %69 : vector<1x128xf32>
    %71 = math.exp %70 : vector<1x128xf32>
    %cst_20 = arith.constant 1.000000e+00 : f32
    %72 = vector.broadcast %cst_20 : f32 to vector<1x128xf32>
    %73 = arith.addf %72, %71 : vector<1x128xf32>
    %74 = arith.divf %72, %73 : vector<1x128xf32>
    %75 = vector.extract_strided_slice %74 {offsets = [0, 0], sizes = [1, 32], strides = [1, 1]} : vector<1x128xf32> to vector<1x32xf32>
    %76 = vector.extract_strided_slice %74 {offsets = [0, 32], sizes = [1, 32], strides = [1, 1]} : vector<1x128xf32> to vector<1x32xf32>
    %77 = vector.extract_strided_slice %74 {offsets = [0, 64], sizes = [1, 32], strides = [1, 1]} : vector<1x128xf32> to vector<1x32xf32>
    %cst_21 = arith.constant 2.000000e+00 : f32
    %78 = vector.broadcast %cst_21 : f32 to vector<1x32xf32>
    %79 = arith.mulf %78, %77 : vector<1x32xf32>
    %cst_22 = arith.constant 1.000000e+00 : f32
    %80 = vector.broadcast %cst_22 : f32 to vector<1x32xf32>
    %81 = arith.subf %79, %80 : vector<1x32xf32>
    %82 = vector.extract_strided_slice %74 {offsets = [0, 96], sizes = [1, 32], strides = [1, 1]} : vector<1x128xf32> to vector<1x32xf32>
    %83 = arith.mulf %76, %64 : vector<1x32xf32>
    %84 = arith.mulf %75, %81 : vector<1x32xf32>
    %85 = arith.addf %83, %84 : vector<1x32xf32>
    %86 = math.tanh %85 : vector<1x32xf32>
    %87 = arith.mulf %82, %86 : vector<1x32xf32>
    %88 = vector.extract_strided_slice %22 {offsets = [3, 0], sizes = [1, 128], strides = [1, 1]} : vector<8x128xf32> to vector<1x128xf32>
    %cst_23 = arith.constant dense<0.000000e+00> : vector<1x128xf32>
    %89 = tpu.matmul %87, %1, %cst_23 {dimension_numbers = #tpu.dot_dimension_numbers<[1], [0], [0], [1], [0, 0, 1, 1], [], []>} : vector<1x32xf32>, vector<32x128xf32>, vector<1x128xf32> -> vector<1x128xf32>
    %90 = arith.addf %88, %89 : vector<1x128xf32>
    %91 = arith.negf %90 : vector<1x128xf32>
    %92 = math.exp %91 : vector<1x128xf32>
    %cst_24 = arith.constant 1.000000e+00 : f32
    %93 = vector.broadcast %cst_24 : f32 to vector<1x128xf32>
    %94 = arith.addf %93, %92 : vector<1x128xf32>
    %95 = arith.divf %93, %94 : vector<1x128xf32>
    %96 = vector.extract_strided_slice %95 {offsets = [0, 0], sizes = [1, 32], strides = [1, 1]} : vector<1x128xf32> to vector<1x32xf32>
    %97 = vector.extract_strided_slice %95 {offsets = [0, 32], sizes = [1, 32], strides = [1, 1]} : vector<1x128xf32> to vector<1x32xf32>
    %98 = vector.extract_strided_slice %95 {offsets = [0, 64], sizes = [1, 32], strides = [1, 1]} : vector<1x128xf32> to vector<1x32xf32>
    %cst_25 = arith.constant 2.000000e+00 : f32
    %99 = vector.broadcast %cst_25 : f32 to vector<1x32xf32>
    %100 = arith.mulf %99, %98 : vector<1x32xf32>
    %cst_26 = arith.constant 1.000000e+00 : f32
    %101 = vector.broadcast %cst_26 : f32 to vector<1x32xf32>
    %102 = arith.subf %100, %101 : vector<1x32xf32>
    %103 = vector.extract_strided_slice %95 {offsets = [0, 96], sizes = [1, 32], strides = [1, 1]} : vector<1x128xf32> to vector<1x32xf32>
    %104 = arith.mulf %97, %85 : vector<1x32xf32>
    %105 = arith.mulf %96, %102 : vector<1x32xf32>
    %106 = arith.addf %104, %105 : vector<1x32xf32>
    %107 = math.tanh %106 : vector<1x32xf32>
    %108 = arith.mulf %103, %107 : vector<1x32xf32>
    %109 = vector.extract_strided_slice %22 {offsets = [4, 0], sizes = [1, 128], strides = [1, 1]} : vector<8x128xf32> to vector<1x128xf32>
    %cst_27 = arith.constant dense<0.000000e+00> : vector<1x128xf32>
    %110 = tpu.matmul %108, %1, %cst_27 {dimension_numbers = #tpu.dot_dimension_numbers<[1], [0], [0], [1], [0, 0, 1, 1], [], []>} : vector<1x32xf32>, vector<32x128xf32>, vector<1x128xf32> -> vector<1x128xf32>
    %111 = arith.addf %109, %110 : vector<1x128xf32>
    %112 = arith.negf %111 : vector<1x128xf32>
    %113 = math.exp %112 : vector<1x128xf32>
    %cst_28 = arith.constant 1.000000e+00 : f32
    %114 = vector.broadcast %cst_28 : f32 to vector<1x128xf32>
    %115 = arith.addf %114, %113 : vector<1x128xf32>
    %116 = arith.divf %114, %115 : vector<1x128xf32>
    %117 = vector.extract_strided_slice %116 {offsets = [0, 0], sizes = [1, 32], strides = [1, 1]} : vector<1x128xf32> to vector<1x32xf32>
    %118 = vector.extract_strided_slice %116 {offsets = [0, 32], sizes = [1, 32], strides = [1, 1]} : vector<1x128xf32> to vector<1x32xf32>
    %119 = vector.extract_strided_slice %116 {offsets = [0, 64], sizes = [1, 32], strides = [1, 1]} : vector<1x128xf32> to vector<1x32xf32>
    %cst_29 = arith.constant 2.000000e+00 : f32
    %120 = vector.broadcast %cst_29 : f32 to vector<1x32xf32>
    %121 = arith.mulf %120, %119 : vector<1x32xf32>
    %cst_30 = arith.constant 1.000000e+00 : f32
    %122 = vector.broadcast %cst_30 : f32 to vector<1x32xf32>
    %123 = arith.subf %121, %122 : vector<1x32xf32>
    %124 = vector.extract_strided_slice %116 {offsets = [0, 96], sizes = [1, 32], strides = [1, 1]} : vector<1x128xf32> to vector<1x32xf32>
    %125 = arith.mulf %118, %106 : vector<1x32xf32>
    %126 = arith.mulf %117, %123 : vector<1x32xf32>
    %127 = arith.addf %125, %126 : vector<1x32xf32>
    %128 = math.tanh %127 : vector<1x32xf32>
    %129 = arith.mulf %124, %128 : vector<1x32xf32>
    %130 = vector.extract_strided_slice %22 {offsets = [5, 0], sizes = [1, 128], strides = [1, 1]} : vector<8x128xf32> to vector<1x128xf32>
    %cst_31 = arith.constant dense<0.000000e+00> : vector<1x128xf32>
    %131 = tpu.matmul %129, %1, %cst_31 {dimension_numbers = #tpu.dot_dimension_numbers<[1], [0], [0], [1], [0, 0, 1, 1], [], []>} : vector<1x32xf32>, vector<32x128xf32>, vector<1x128xf32> -> vector<1x128xf32>
    %132 = arith.addf %130, %131 : vector<1x128xf32>
    %133 = arith.negf %132 : vector<1x128xf32>
    %134 = math.exp %133 : vector<1x128xf32>
    %cst_32 = arith.constant 1.000000e+00 : f32
    %135 = vector.broadcast %cst_32 : f32 to vector<1x128xf32>
    %136 = arith.addf %135, %134 : vector<1x128xf32>
    %137 = arith.divf %135, %136 : vector<1x128xf32>
    %138 = vector.extract_strided_slice %137 {offsets = [0, 0], sizes = [1, 32], strides = [1, 1]} : vector<1x128xf32> to vector<1x32xf32>
    %139 = vector.extract_strided_slice %137 {offsets = [0, 32], sizes = [1, 32], strides = [1, 1]} : vector<1x128xf32> to vector<1x32xf32>
    %140 = vector.extract_strided_slice %137 {offsets = [0, 64], sizes = [1, 32], strides = [1, 1]} : vector<1x128xf32> to vector<1x32xf32>
    %cst_33 = arith.constant 2.000000e+00 : f32
    %141 = vector.broadcast %cst_33 : f32 to vector<1x32xf32>
    %142 = arith.mulf %141, %140 : vector<1x32xf32>
    %cst_34 = arith.constant 1.000000e+00 : f32
    %143 = vector.broadcast %cst_34 : f32 to vector<1x32xf32>
    %144 = arith.subf %142, %143 : vector<1x32xf32>
    %145 = vector.extract_strided_slice %137 {offsets = [0, 96], sizes = [1, 32], strides = [1, 1]} : vector<1x128xf32> to vector<1x32xf32>
    %146 = arith.mulf %139, %127 : vector<1x32xf32>
    %147 = arith.mulf %138, %144 : vector<1x32xf32>
    %148 = arith.addf %146, %147 : vector<1x32xf32>
    %149 = math.tanh %148 : vector<1x32xf32>
    %150 = arith.mulf %145, %149 : vector<1x32xf32>
    %151 = vector.extract_strided_slice %22 {offsets = [6, 0], sizes = [1, 128], strides = [1, 1]} : vector<8x128xf32> to vector<1x128xf32>
    %cst_35 = arith.constant dense<0.000000e+00> : vector<1x128xf32>
    %152 = tpu.matmul %150, %1, %cst_35 {dimension_numbers = #tpu.dot_dimension_numbers<[1], [0], [0], [1], [0, 0, 1, 1], [], []>} : vector<1x32xf32>, vector<32x128xf32>, vector<1x128xf32> -> vector<1x128xf32>
    %153 = arith.addf %151, %152 : vector<1x128xf32>
    %154 = arith.negf %153 : vector<1x128xf32>
    %155 = math.exp %154 : vector<1x128xf32>
    %cst_36 = arith.constant 1.000000e+00 : f32
    %156 = vector.broadcast %cst_36 : f32 to vector<1x128xf32>
    %157 = arith.addf %156, %155 : vector<1x128xf32>
    %158 = arith.divf %156, %157 : vector<1x128xf32>
    %159 = vector.extract_strided_slice %158 {offsets = [0, 0], sizes = [1, 32], strides = [1, 1]} : vector<1x128xf32> to vector<1x32xf32>
    %160 = vector.extract_strided_slice %158 {offsets = [0, 32], sizes = [1, 32], strides = [1, 1]} : vector<1x128xf32> to vector<1x32xf32>
    %161 = vector.extract_strided_slice %158 {offsets = [0, 64], sizes = [1, 32], strides = [1, 1]} : vector<1x128xf32> to vector<1x32xf32>
    %cst_37 = arith.constant 2.000000e+00 : f32
    %162 = vector.broadcast %cst_37 : f32 to vector<1x32xf32>
    %163 = arith.mulf %162, %161 : vector<1x32xf32>
    %cst_38 = arith.constant 1.000000e+00 : f32
    %164 = vector.broadcast %cst_38 : f32 to vector<1x32xf32>
    %165 = arith.subf %163, %164 : vector<1x32xf32>
    %166 = vector.extract_strided_slice %158 {offsets = [0, 96], sizes = [1, 32], strides = [1, 1]} : vector<1x128xf32> to vector<1x32xf32>
    %167 = arith.mulf %160, %148 : vector<1x32xf32>
    %168 = arith.mulf %159, %165 : vector<1x32xf32>
    %169 = arith.addf %167, %168 : vector<1x32xf32>
    %170 = math.tanh %169 : vector<1x32xf32>
    %171 = arith.mulf %166, %170 : vector<1x32xf32>
    %172 = vector.extract_strided_slice %22 {offsets = [7, 0], sizes = [1, 128], strides = [1, 1]} : vector<8x128xf32> to vector<1x128xf32>
    %cst_39 = arith.constant dense<0.000000e+00> : vector<1x128xf32>
    %173 = tpu.matmul %171, %1, %cst_39 {dimension_numbers = #tpu.dot_dimension_numbers<[1], [0], [0], [1], [0, 0, 1, 1], [], []>} : vector<1x32xf32>, vector<32x128xf32>, vector<1x128xf32> -> vector<1x128xf32>
    %174 = arith.addf %172, %173 : vector<1x128xf32>
    %175 = arith.negf %174 : vector<1x128xf32>
    %176 = math.exp %175 : vector<1x128xf32>
    %cst_40 = arith.constant 1.000000e+00 : f32
    %177 = vector.broadcast %cst_40 : f32 to vector<1x128xf32>
    %178 = arith.addf %177, %176 : vector<1x128xf32>
    %179 = arith.divf %177, %178 : vector<1x128xf32>
    %180 = vector.extract_strided_slice %179 {offsets = [0, 0], sizes = [1, 32], strides = [1, 1]} : vector<1x128xf32> to vector<1x32xf32>
    %181 = vector.extract_strided_slice %179 {offsets = [0, 32], sizes = [1, 32], strides = [1, 1]} : vector<1x128xf32> to vector<1x32xf32>
    %182 = vector.extract_strided_slice %179 {offsets = [0, 64], sizes = [1, 32], strides = [1, 1]} : vector<1x128xf32> to vector<1x32xf32>
    %cst_41 = arith.constant 2.000000e+00 : f32
    %183 = vector.broadcast %cst_41 : f32 to vector<1x32xf32>
    %184 = arith.mulf %183, %182 : vector<1x32xf32>
    %cst_42 = arith.constant 1.000000e+00 : f32
    %185 = vector.broadcast %cst_42 : f32 to vector<1x32xf32>
    %186 = arith.subf %184, %185 : vector<1x32xf32>
    %187 = vector.extract_strided_slice %179 {offsets = [0, 96], sizes = [1, 32], strides = [1, 1]} : vector<1x128xf32> to vector<1x32xf32>
    %188 = arith.mulf %181, %169 : vector<1x32xf32>
    %189 = arith.mulf %180, %186 : vector<1x32xf32>
    %190 = arith.addf %188, %189 : vector<1x32xf32>
    %191 = math.tanh %190 : vector<1x32xf32>
    %192 = arith.mulf %187, %191 : vector<1x32xf32>
    %193 = tpu.concatenate %45, %66, %87, %108, %129, %150, %171, %192 in 0 : vector<1x32xf32>, vector<1x32xf32>, vector<1x32xf32>, vector<1x32xf32>, vector<1x32xf32>, vector<1x32xf32>, vector<1x32xf32>, vector<1x32xf32> -> vector<8x32xf32>
    %cst_43 = arith.constant dense<0.000000e+00> : vector<8x128xf32>
    %194 = tpu.matmul %193, %6, %cst_43 {dimension_numbers = #tpu.dot_dimension_numbers<[1], [0], [0], [1], [0, 0, 1, 1], [], []>} : vector<8x32xf32>, vector<32x128xf32>, vector<8x128xf32> -> vector<8x128xf32>
    %195 = vector.broadcast %5 : vector<1x128xf32> to vector<8x128xf32>
    %196 = arith.addf %194, %195 : vector<8x128xf32>
    %c0_44 = arith.constant 0 : index
    %c0_45 = arith.constant 0 : index
    %197 = vector.load %arg2[%c0_44, %c0_45] : memref<8x128xf32, #tpu.memory_space<vmem>>, vector<8x128xf32>
    tpu.vector_store %arg2[%c0_44, %c0_45], %196 {strides = array<i32>} : memref<8x128xf32, #tpu.memory_space<vmem>>, vector<8x128xf32>,
    return
  }
}

</mosaic_0001>

<llo_original>
// kernel: tpu_custom_call.1
$region0: #{tpu_custom_call.1}
  #allocation0 [shape = 'u32[]', space=smem, size = 0x4, offset = 0x4, fixed_abs, tag = 'smem constant byte address 0x4 - core index']
  #allocation1 [shape = 'u32[144,128]{1,0:T(1,128)}', space=vmem, size = 0x12000, scoped, tag = 'internal scratch']
  %s0 = inlined_call_operand.hbm [shape: f32[8,128], index: 0, kind: input, shape index: {}]
  %s1 = inlined_call_operand.hbm [shape: f32[200,128], index: 1, kind: input, shape index: {}]
  %s2 = inlined_call_operand.hbm [shape: f32[8,128], index: 2, kind: output, shape index: {}]
  %s3 = sld [smem:[#allocation0]]
  $region26: #{tpu_custom_call.1} parent=0
    _
  %s5 = ssub.s32 1, %s3
  %s6 = scalar_select 0, %s5, %s3
  $region1: #{tpu_custom_call.1} parent=0
    #allocation2 [shape = 'u8[4096]{0}', space=vmem, size = 0x1000, scoped, tag = 'input window, operand 0, single buffered']
    #allocation3 [shape = 's32[1]{0}', space=sflag, size = 0x4, scoped, tag = 'scoped memory for tpu_custom_call.1']
    #allocation4 [shape = 's32[1]{0}', space=sflag, size = 0x4, scoped, tag = 'scoped memory for tpu_custom_call.1']
    #allocation5 [shape = 'u8[102400]{0}', space=vmem, size = 0x19000, scoped, tag = 'input window, operand 1, single buffered']
    #allocation6 [shape = 's32[1]{0}', space=sflag, size = 0x4, scoped, tag = 'scoped memory for tpu_custom_call.1']
    #allocation7 [shape = 'u8[4096]{0}', space=vmem, size = 0x1000, scoped, tag = 'output window, operand 0, single buffered']
    %7 = vsyncpa [#allocation3], 0
    %8 = vsyncpa [#allocation6], 0
    %9 = vsyncpa [#allocation4], 0
    // Predicated region
    $region2: #{tpu_custom_call.1} parent=1 // pred_check
      _
    $region3: #{tpu_custom_call.1} parent=1 // pred_check_branch
      %11 = sbr.rel (0) target = $region5
    $region4: #{tpu_custom_call.1} parent=1 // pred_region
      %s13 = ssub.s32 128, 128
      %14 = vsyncadd [#allocation3], %s13
      %s16 = sshll.u32 [#allocation2], 4
      %s17 = int_to_ptr.vmem [resolvable:$true] %s16
      %19 = dma.hbm_to_vmem [thread:$0]  %s0, 128, %s17, [#allocation3]
    $region5: #{tpu_custom_call.1} parent=1 // pred_fallthru
      _
    // Predicated region
    $region6: #{tpu_custom_call.1} parent=1 // pred_check
      _
    $region7: #{tpu_custom_call.1} parent=1 // pred_check_branch
      %21 = sbr.rel (0) target = $region9
    $region8: #{tpu_custom_call.1} parent=1 // pred_region
      %s23 = ssub.s32 3200, 3200
      %24 = vsyncadd [#allocation6], %s23
      %s25 = sshll.u32 [#allocation5], 4
      %s26 = int_to_ptr.vmem [resolvable:$true] %s25
      %31 = dma.hbm_to_vmem [thread:$0]  %s1, 3200, %s26, [#allocation6], 128, 128, 8
    $region9: #{tpu_custom_call.1} parent=1 // pred_fallthru
      _
    // Predicated region
    $region10: #{tpu_custom_call.1} parent=1 // pred_check
      _
    $region11: #{tpu_custom_call.1} parent=1 // pred_check_branch
      %33 = sbr.rel (0) target = $region13
    $region12: #{tpu_custom_call.1} parent=1 // pred_region
      %34 = dma.done [#allocation3], 128
    $region13: #{tpu_custom_call.1} parent=1 // pred_fallthru
      _
    // Predicated region
    $region14: #{tpu_custom_call.1} parent=1 // pred_check
      _
    $region15: #{tpu_custom_call.1} parent=1 // pred_check_branch
      %36 = sbr.rel (0) target = $region17
    $region16: #{tpu_custom_call.1} parent=1 // pred_region
      %37 = dma.done [#allocation6], 3200
    $region17: #{tpu_custom_call.1} parent=1 // pred_fallthru
      _
    %v38 = vld [vmem:[#allocation5] sm:$0xff]
    %v39 = vld [vmem:[#allocation5 + $0x8] sm:$0xff]
    %v40 = vld [vmem:[#allocation5 + $0x10] sm:$0xff]
    %v41 = vld [vmem:[#allocation5 + $0x18] sm:$0xff]
    %v42 = vld [vmem:[#allocation5 + $0x20] sm:$0xff]
    %v43 = vld [vmem:[#allocation5 + $0x28] sm:$0xff]
    %v44 = vld [vmem:[#allocation5 + $0x30] sm:$0xff]
    %v45 = vld [vmem:[#allocation5 + $0x38] sm:$0xff]
    %v46 = vld [vmem:[#allocation5 + $0x40] sm:$0xff]
    %v47 = vld [vmem:[#allocation5 + $0x48] sm:$0xff]
    %v48 = vld [vmem:[#allocation5 + $0x50] sm:$0xff]
    %v49 = vld [vmem:[#allocation5 + $0x58] sm:$0xff]
    %v50 = vld [vmem:[#allocation5 + $0x60] sm:$0xff]
    %v51 = vld [vmem:[#allocation5 + $0x68] sm:$0xff]
    %v52 = vld [vmem:[#allocation5 + $0x70] sm:$0xff]
    %v53 = vld [vmem:[#allocation5 + $0x78] sm:$0xff]
    %v54 = vld [vmem:[#allocation5 + $0x80] sm:$0xff]
    %v55 = vld [vmem:[#allocation5 + $0x88] sm:$0xff]
    %v56 = vld [vmem:[#allocation5 + $0x90] sm:$0xff]
    %v57 = vld [vmem:[#allocation5 + $0x98] sm:$0xff]
    %v58 = vld [vmem:[#allocation5 + $0xa0] sm:$0x1]
    %v59 = vld [vmem:[#allocation5 + $0xa1] sm:$0x1]
    %v60 = vld [vmem:[#allocation5 + $0xa2] sm:$0x1]
    %v61 = vld [vmem:[#allocation5 + $0xa3] sm:$0x1]
    %v62 = vld [vmem:[#allocation5 + $0xa8] sm:$0xff]
    %v63 = vld [vmem:[#allocation5 + $0xb0] sm:$0xff]
    %v64 = vld [vmem:[#allocation5 + $0xb8] sm:$0xff]
    %v65 = vld [vmem:[#allocation5 + $0xc0] sm:$0xff]
    %v66 = vld [vmem:[#allocation2] sm:$0xff]
    %68 = vset.pattern.permute.xlu0 127
    %69 = vperm.xlu0 %68, %v66
    %v70 = vpop.permute.xlu0 %69
    %v72 = vlaneseq
    %v73 = vshrl.u32 %v72, 7
    %v74 = vsub.s32 0, %v73
    %v75 = vrot.slane %v59, %v74
    %v76 = vmul.f32 %v70, %v75
    %v77 = vlaneseq
    %v78 = vshrl.u32 %v77, 7
    %v79 = vsub.s32 0, %v78
    %v80 = vrot.slane %v60, %v79
    %v81 = vadd.f32 %v76, %v80
    %v82 = vlaneseq
    %v83 = vand.u32 %v82, 127
    %vm84 = vcmp.eq.s32.totalorder %v83, 79
    %v85 = vand.u32 2147483647, %v81
    %vm86 = vcmp.le.f32.partialorder %v85, 0.7853982
    %vm87 = vcmp.lt.s32.totalorder %v81, 0
    %v88 = vand.u32 %v81, 2139095040
    %v89 = vshrl.u32 %v88, 23
    %v90 = vsub.s32 %v89, 127
    %v91 = vand.u32 2147483647, %v81
    %v92 = vand.u32 %v91, 8388607
    %v93 = vor.u32 %v92, 8388608
    %v94 = vsub.s32 0, %v93
    %v95 = vadd.s32 %v90, 1
    %vm96 = vcmp.gt.s32.totalorder %v95, 0
    %v97 = vsel %vm96, %v95, 0
    %v98 = vshrl.u32 %v97, 5
    %v99 = vand.u32 %v97, 31
    %v100 = vsub.s32 32, %v99
    %v101 = vshrl.u32 683565275, %v100
    %v102 = vshll.u32 683565275, %v99
    %v103 = vshrl.u32 2475754826, %v100
    %v104 = vor.u32 %v102, %v103
    %v105 = vshll.u32 2475754826, %v99
    %v106 = vshrl.u32 2131351028, %v100
    %v107 = vor.u32 %v105, %v106
    %v108 = vshll.u32 2131351028, %v99
    %v109 = vshrl.u32 2102212464, %v100
    %v110 = vor.u32 %v108, %v109
    %v111 = vshll.u32 2102212464, %v99
    %v112 = vshrl.u32 920167782, %v100
    %v113 = vor.u32 %v111, %v112
    %v114 = vshll.u32 920167782, %v99
    %v115 = vshrl.u32 1326507024, %v100
    %v116 = vor.u32 %v114, %v115
    %vm117 = vcmp.lt.s32.totalorder %v98, 1
    %vm118 = vcmp.lt.s32.totalorder %v98, 2
    %vm119 = vcmp.lt.s32.totalorder %v98, 3
    %vm120 = vcmp.lt.s32.totalorder %v98, 4
    %v121 = vsel %vm117, %v101, %v104
    %v122 = vsel %vm120, %v110, 2102212464
    %v123 = vsel %vm119, %v107, %v122
    %v124 = vsel %vm118, %v121, %v123
    %v125 = vsel %vm117, %v104, %v107
    %v126 = vsel %vm120, %v113, 920167782
    %v127 = vsel %vm119, %v110, %v126
    %v128 = vsel %vm118, %v125, %v127
    %v129 = vsel %vm117, %v107, %v110
    %v130 = vsel %vm120, %v116, 1326507024
    %v131 = vsel %vm119, %v113, %v130
    %v132 = vsel %vm118, %v129, %v131
    %v133 = vshll.u32 %v93, 8
    %v134 = vmul.u32.u64.compose %v133, %v132
    %v135 = vextract.low.u32 %v134
    %v136 = vextract.high.u32 %v134
    %v137 = vmul.u32.u64.compose %v133, %v128
    %v138 = vextract.low.u32 %v137
    %v139 = vextract.high.u32 %v137
    %v140 = vmul.u32 %v133, %v124
    %v141 = vadd.s32 %v136, %v138
    %vm142 = vc.u32 %v136, %v138
    %v143 = vadd.s32 %v139, 1
    %v144 = vsel %vm142, %v143, %v139
    %v145 = vadd.s32 %v140, %v144
    %v146 = vadd.s32 %v145, 536870912
    %v147 = vshrl.u32 %v146, 30
    %v148 = vshll.u32 %v147, 30
    %v149 = vsub.s32 %v145, %v148
    %vm150 = vcmp.lt.s32.totalorder %v149, 0
    %v151 = vsub.s32 0, %v149
    %v152 = vsel %vm150, %v151, %v149
    %v153 = vclz %v152
    %v154 = vsub.s32 %v153, 2
    %vm155 = vcmp.gt.s32.totalorder 0, %v154
    %v156 = vsel %vm155, 0, %v154
    %v157 = vsub.s32 32, %v156
    %v158 = vshll.u32 %v149, %v156
    %v159 = vshrl.u32 %v141, %v157
    %v160 = vor.u32 %v158, %v159
    %v161 = vsub.s32 4294967266, %v156
    %v162 = vadd.s32 %v161, 127
    %v163 = vshll.u32 %v162, 23
    %v164 = vor.u32 4788187, %v163
    %v165 = vand.u32 2147483647, %v164
    %v167 = vcvt.s32.f32 %v160
    %v168 = vmul.f32 %v167, %v165
    %v169 = vxor.u32 %v168, 2147483648
    %v170 = vsel %vm87, %v169, %v168
    %v171 = vsub.s32 4, %v147
    %v172 = vsel %vm87, %v171, %v147
    %v173 = vsel %vm86, %v81, %v170
    %v174 = vsel %vm86, 0, %v172
    %v175 = vcosq.f32.pop %v173
    %v176 = vsinq.f32.pop %v173
    %vm177 = vweird.f32 %v81
    %v178 = vadd.s32 %v174, 3
    %v179 = vand.u32 %v178, 3
    %vm180 = vcmp.lt.s32.totalorder %v179, 2
    %vm181 = vcmp.eq.s32.totalorder %v179, 0
    %v182 = vxor.u32 %v176, 2147483648
    %v183 = vsel %vm181, %v175, %v182
    %vm184 = vcmp.eq.s32.totalorder %v179, 2
    %v185 = vxor.u32 %v175, 2147483648
    %v186 = vsel %vm184, %v185, %v176
    %v187 = vsel %vm180, %v183, %v186
    %v188 = vsel %vm177, nan, %v187
    %v189 = vsel %vm84, %v81, %v188
    %v190 = vadd.f32 %v66, %v189
    %v191 = vlaneseq
    %v192 = vshrl.u32 %v191, 7
    %v193 = vsub.s32 0, %v192
    %v194 = vrot.slane %v58, %v193
    %195 = vmatprep.subr.mxu0 0.0
    %196 = vmatpush1.msra.mxu0 %v38
    %197 = vmatprep.subr.mxu0 0.0
    %198 = vmatpush1.msra.mxu0 %v39
    %199 = vmatprep.subr.mxu0 0.0
    %200 = vmatpush1.msra.mxu0 %v40
    %201 = vmatprep.subr.mxu0 0.0
    %202 = vmatpush1.msra.mxu0 %v41
    %203 = vmatprep.subr.mxu0 0.0
    %204 = vmatpush1.msra.mxu0 %v42
    %205 = vmatprep.subr.mxu0 0.0
    %206 = vmatpush1.msra.mxu0 %v43
    %207 = vmatprep.subr.mxu0 0.0
    %208 = vmatpush1.msra.mxu0 %v44
    %209 = vmatprep.subr.mxu0 0.0
    %210 = vmatpush1.msra.mxu0 %v45
    %211 = vmatprep.subr.mxu0 0.0
    %212 = vmatpush1.msra.mxu0 %v46
    %213 = vmatprep.subr.mxu0 0.0
    %214 = vmatpush1.msra.mxu0 %v47
    %215 = vmatprep.subr.mxu0 0.0
    %216 = vmatpush1.msra.mxu0 %v48
    %217 = vmatprep.subr.mxu0 0.0
    %218 = vmatpush1.msra.mxu0 %v49
    %219 = vmatprep.subr.mxu0 0.0
    %220 = vmatpush1.msra.mxu0 %v50
    %221 = vmatprep.subr.mxu0 0.0
    %222 = vmatpush1.msra.mxu0 %v51
    %223 = vmatprep.subr.mxu0 0.0
    %224 = vmatpush1.msra.mxu0 %v52
    %225 = vmatprep.subr.mxu0 0.0
    %226 = vmatpush1.msra.mxu0 %v53
    %227 = vmatprep.subr.mxu0 0.0
    %228 = vmatpush1.msra.mxu0 0.0
    %229 = vmatprep.subr.mxu0 0.0
    %230 = vmatpush1.msra.mxu0 0.0
    %231 = vmatprep.subr.mxu0 0.0
    %232 = vmatpush1.msra.mxu0 0.0
    %233 = vmatprep.subr.mxu0 0.0
    %234 = vmatpush1.msra.mxu0 0.0
    %235 = vmatprep.subr.mxu0 0.0
    %236 = vmatpush1.msra.mxu0 0.0
    %237 = vmatprep.subr.mxu0 0.0
    %238 = vmatpush1.msra.mxu0 0.0
    %239 = vmatprep.subr.mxu0 0.0
    %240 = vmatpush1.msra.mxu0 0.0
    %241 = vmatprep.subr.mxu0 0.0
    %242 = vmatpush1.msra.mxu0 0.0
    %243 = vmatprep.subr.mxu0 0.0
    %244 = vmatpush1.msra.mxu0 0.0
    %245 = vmatprep.subr.mxu0 0.0
    %246 = vmatpush1.msra.mxu0 0.0
    %247 = vmatprep.subr.mxu0 0.0
    %248 = vmatpush1.msra.mxu0 0.0
    %249 = vmatprep.subr.mxu0 0.0
    %250 = vmatpush1.msra.mxu0 0.0
    %251 = vmatprep.subr.mxu0 0.0
    %252 = vmatpush1.msra.mxu0 0.0
    %253 = vmatprep.subr.mxu0 0.0
    %254 = vmatpush1.msra.mxu0 0.0
    %255 = vmatprep.subr.mxu0 0.0
    %256 = vmatpush1.msra.mxu0 0.0
    %257 = vmatprep.subr.mxu0 0.0
    %258 = vmatpush1.msra.mxu0 0.0
    %259 = vmatprep.mubr.f32.mxu0 0.0
    %260 = vmatmul.mubr.f32.gmra.mrb[0].mxu0 %v190
    %v261 = vpop.f32.mrb[0].mxu0
    %v262 = vadd.f32 %v194, %v261
    %v263 = vpop.f32.mrb[0].mxu0
    %264 = vdwg.mxu0
    %vm265 = vcmask 261120
    %v267 = vsel %vm265, 0.0, 0
    %269 = vmatprep.subr.mxu0 0.0
    %270 = vmatpush1.msra.mxu0 %v54
    %271 = vmatprep.subr.mxu0 0.0
    %272 = vmatpush1.msra.mxu0 %v55
    %273 = vmatprep.subr.mxu0 0.0
    %274 = vmatpush1.msra.mxu0 %v56
    %275 = vmatprep.subr.mxu0 0.0
    %276 = vmatpush1.msra.mxu0 %v57
    %277 = vmatprep.subr.mxu0 0.0
    %278 = vmatpush1.msra.mxu0 0.0
    %279 = vmatprep.subr.mxu0 0.0
    %280 = vmatpush1.msra.mxu0 0.0
    %281 = vmatprep.subr.mxu0 0.0
    %282 = vmatpush1.msra.mxu0 0.0
    %283 = vmatprep.subr.mxu0 0.0
    %284 = vmatpush1.msra.mxu0 0.0
    %285 = vmatprep.subr.mxu0 0.0
    %286 = vmatpush1.msra.mxu0 0.0
    %287 = vmatprep.subr.mxu0 0.0
    %288 = vmatpush1.msra.mxu0 0.0
    %289 = vmatprep.subr.mxu0 0.0
    %290 = vmatpush1.msra.mxu0 0.0
    %291 = vmatprep.subr.mxu0 0.0
    %292 = vmatpush1.msra.mxu0 0.0
    %293 = vmatprep.subr.mxu0 0.0
    %294 = vmatpush1.msra.mxu0 0.0
    %295 = vmatprep.subr.mxu0 0.0
    %296 = vmatpush1.msra.mxu0 0.0
    %297 = vmatprep.subr.mxu0 0.0
    %298 = vmatpush1.msra.mxu0 0.0
    %299 = vmatprep.subr.mxu0 0.0
    %300 = vmatpush1.msra.mxu0 0.0
    %301 = vmatprep.subr.mxu0 0.0
    %302 = vmatpush1.msra.mxu0 0.0
    %303 = vmatprep.subr.mxu0 0.0
    %304 = vmatpush1.msra.mxu0 0.0
    %305 = vmatprep.subr.mxu0 0.0
    %306 = vmatpush1.msra.mxu0 0.0
    %307 = vmatprep.subr.mxu0 0.0
    %308 = vmatpush1.msra.mxu0 0.0
    %309 = vmatprep.subr.mxu0 0.0
    %310 = vmatpush1.msra.mxu0 0.0
    %311 = vmatprep.subr.mxu0 0.0
    %312 = vmatpush1.msra.mxu0 0.0
    %313 = vmatprep.subr.mxu0 0.0
    %314 = vmatpush1.msra.mxu0 0.0
    %315 = vmatprep.subr.mxu0 0.0
    %316 = vmatpush1.msra.mxu0 0.0
    %317 = vmatprep.subr.mxu0 0.0
    %318 = vmatpush1.msra.mxu0 0.0
    %319 = vmatprep.subr.mxu0 0.0
    %320 = vmatpush1.msra.mxu0 0.0
    %321 = vmatprep.subr.mxu0 0.0
    %322 = vmatpush1.msra.mxu0 0.0
    %323 = vmatprep.subr.mxu0 0.0
    %324 = vmatpush1.msra.mxu0 0.0
    %325 = vmatprep.subr.mxu0 0.0
    %326 = vmatpush1.msra.mxu0 0.0
    %327 = vmatprep.subr.mxu0 0.0
    %328 = vmatpush1.msra.mxu0 0.0
    %329 = vmatprep.subr.mxu0 0.0
    %330 = vmatpush1.msra.mxu0 0.0
    %331 = vmatprep.subr.mxu0 0.0
    %332 = vmatpush1.msra.mxu0 0.0
    %333 = vmatprep.mubr.f32.mxu0 0.0
    %334 = vmatmul.mubr.f32.gmra.mrb[0].mxu0 %v267
    %v335 = vpop.f32.mrb[0].mxu0
    %v336 = vadd.f32 0.0, %v335
    %v337 = vpop.f32.mrb[0].mxu0
    %338 = vdwg.mxu0
    %v339 = vadd.f32 %v262, %v336
    %v340 = vxor.u32 %v339, 2147483648
    %v341 = vmul.f32 %v340, 1.442695
    %v342 = vpow.pop %v341
    %v343 = vadd.f32 %v342, 1.0
    %v344 = vrcp.pop %v343
    %v345 = vmul.f32 1.0, %v344
    %v346 = vmul.f32 %v345, 2.0
    %v347 = vsub.f32 %v346, 1.0
    %v348 = vmul.f32 %v345, 0.0
    %350 = vrot.lane.b32.xlu0 %v347, 64
    %v351 = vpop.permute.xlu0 %350
    %v353 = vmul.f32 %v345, %v351
    %355 = vrot.lane.b32.xlu0 %v353, 32
    %v356 = vpop.permute.xlu0 %355
    %v358 = vadd.f32 %v348, %v356
    %v359 = vtanh.pop %v358
    %361 = vrot.lane.b32.xlu0 %v359, 64
    %v362 = vpop.permute.xlu0 %361
    %v364 = vmul.f32 %v345, %v362
    %366 = vrot.lane.b32.xlu0 %v364, 32
    %v367 = vpop.permute.xlu0 %366
    %v368 = vsel %vm265, %v367, 0
    %370 = vmatprep.subr.mxu0 0.0
    %371 = vmatpush1.msra.mxu0 %v54
    %372 = vmatprep.subr.mxu0 0.0
    %373 = vmatpush1.msra.mxu0 %v55
    %374 = vmatprep.subr.mxu0 0.0
    %375 = vmatpush1.msra.mxu0 %v56
    %376 = vmatprep.subr.mxu0 0.0
    %377 = vmatpush1.msra.mxu0 %v57
    %378 = vmatprep.subr.mxu0 0.0
    %379 = vmatpush1.msra.mxu0 0.0
    %380 = vmatprep.subr.mxu0 0.0
    %381 = vmatpush1.msra.mxu0 0.0
    %382 = vmatprep.subr.mxu0 0.0
    %383 = vmatpush1.msra.mxu0 0.0
    %384 = vmatprep.subr.mxu0 0.0
    %385 = vmatpush1.msra.mxu0 0.0
    %386 = vmatprep.subr.mxu0 0.0
    %387 = vmatpush1.msra.mxu0 0.0
    %388 = vmatprep.subr.mxu0 0.0
    %389 = vmatpush1.msra.mxu0 0.0
    %390 = vmatprep.subr.mxu0 0.0
    %391 = vmatpush1.msra.mxu0 0.0
    %392 = vmatprep.subr.mxu0 0.0
    %393 = vmatpush1.msra.mxu0 0.0
    %394 = vmatprep.subr.mxu0 0.0
    %395 = vmatpush1.msra.mxu0 0.0
    %396 = vmatprep.subr.mxu0 0.0
    %397 = vmatpush1.msra.mxu0 0.0
    %398 = vmatprep.subr.mxu0 0.0
    %399 = vmatpush1.msra.mxu0 0.0
    %400 = vmatprep.subr.mxu0 0.0
    %401 = vmatpush1.msra.mxu0 0.0
    %402 = vmatprep.subr.mxu0 0.0
    %403 = vmatpush1.msra.mxu0 0.0
    %404 = vmatprep.subr.mxu0 0.0
    %405 = vmatpush1.msra.mxu0 0.0
    %406 = vmatprep.subr.mxu0 0.0
    %407 = vmatpush1.msra.mxu0 0.0
    %408 = vmatprep.subr.mxu0 0.0
    %409 = vmatpush1.msra.mxu0 0.0
    %410 = vmatprep.subr.mxu0 0.0
    %411 = vmatpush1.msra.mxu0 0.0
    %412 = vmatprep.subr.mxu0 0.0
    %413 = vmatpush1.msra.mxu0 0.0
    %414 = vmatprep.subr.mxu0 0.0
    %415 = vmatpush1.msra.mxu0 0.0
    %416 = vmatprep.subr.mxu0 0.0
    %417 = vmatpush1.msra.mxu0 0.0
    %418 = vmatprep.subr.mxu0 0.0
    %419 = vmatpush1.msra.mxu0 0.0
    %420 = vmatprep.subr.mxu0 0.0
    %421 = vmatpush1.msra.mxu0 0.0
    %422 = vmatprep.subr.mxu0 0.0
    %423 = vmatpush1.msra.mxu0 0.0
    %424 = vmatprep.subr.mxu0 0.0
    %425 = vmatpush1.msra.mxu0 0.0
    %426 = vmatprep.subr.mxu0 0.0
    %427 = vmatpush1.msra.mxu0 0.0
    %428 = vmatprep.subr.mxu0 0.0
    %429 = vmatpush1.msra.mxu0 0.0
    %430 = vmatprep.subr.mxu0 0.0
    %431 = vmatpush1.msra.mxu0 0.0
    %432 = vmatprep.subr.mxu0 0.0
    %433 = vmatpush1.msra.mxu0 0.0
    %434 = vmatprep.mubr.f32.mxu0 0.0
    %435 = vmatmul.mubr.f32.gmra.mrb[0].mxu0 %v368
    %v436 = vpop.f32.mrb[0].mxu0
    %v437 = vadd.f32 0.0, %v436
    %v438 = vpop.f32.mrb[0].mxu0
    %439 = vdwg.mxu0
    %v441 = vrot.slane %v437, 7
    %v443 = vadd.f32 %v262, %v441
    %v444 = vxor.u32 %v443, 2147483648
    %v445 = vmul.f32 %v444, 1.442695
    %v446 = vpow.pop %v445
    %v447 = vadd.f32 %v446, 1.0
    %v448 = vrcp.pop %v447
    %v449 = vmul.f32 1.0, %v448
    %v450 = vmul.f32 %v449, 2.0
    %v451 = vsub.f32 %v450, 1.0
    %v453 = vrot.slane %v358, 7
    %v455 = vmul.f32 %v449, %v453
    %457 = vrot.lane.b32.xlu0 %v451, 64
    %v458 = vpop.permute.xlu0 %457
    %v460 = vmul.f32 %v449, %v458
    %462 = vrot.lane.b32.xlu0 %v460, 32
    %v463 = vpop.permute.xlu0 %462
    %v465 = vadd.f32 %v455, %v463
    %v466 = vtanh.pop %v465
    %468 = vrot.lane.b32.xlu0 %v466, 64
    %v469 = vpop.permute.xlu0 %468
    %v471 = vmul.f32 %v449, %v469
    %v473 = vrot.slane %v471, 1
    %474 = vrot.lane.b32.xlu0 %v473, 32
    %v475 = vpop.permute.xlu0 %474
    %v476 = vsel %vm265, %v475, 0
    %478 = vmatprep.subr.mxu0 0.0
    %479 = vmatpush1.msra.mxu0 %v54
    %480 = vmatprep.subr.mxu0 0.0
    %481 = vmatpush1.msra.mxu0 %v55
    %482 = vmatprep.subr.mxu0 0.0
    %483 = vmatpush1.msra.mxu0 %v56
    %484 = vmatprep.subr.mxu0 0.0
    %485 = vmatpush1.msra.mxu0 %v57
    %486 = vmatprep.subr.mxu0 0.0
    %487 = vmatpush1.msra.mxu0 0.0
    %488 = vmatprep.subr.mxu0 0.0
    %489 = vmatpush1.msra.mxu0 0.0
    %490 = vmatprep.subr.mxu0 0.0
    %491 = vmatpush1.msra.mxu0 0.0
    %492 = vmatprep.subr.mxu0 0.0
    %493 = vmatpush1.msra.mxu0 0.0
    %494 = vmatprep.subr.mxu0 0.0
    %495 = vmatpush1.msra.mxu0 0.0
    %496 = vmatprep.subr.mxu0 0.0
    %497 = vmatpush1.msra.mxu0 0.0
    %498 = vmatprep.subr.mxu0 0.0
    %499 = vmatpush1.msra.mxu0 0.0
    %500 = vmatprep.subr.mxu0 0.0
    %501 = vmatpush1.msra.mxu0 0.0
    %502 = vmatprep.subr.mxu0 0.0
    %503 = vmatpush1.msra.mxu0 0.0
    %504 = vmatprep.subr.mxu0 0.0
    %505 = vmatpush1.msra.mxu0 0.0
    %506 = vmatprep.subr.mxu0 0.0
    %507 = vmatpush1.msra.mxu0 0.0
    %508 = vmatprep.subr.mxu0 0.0
    %509 = vmatpush1.msra.mxu0 0.0
    %510 = vmatprep.subr.mxu0 0.0
    %511 = vmatpush1.msra.mxu0 0.0
    %512 = vmatprep.subr.mxu0 0.0
    %513 = vmatpush1.msra.mxu0 0.0
    %514 = vmatprep.subr.mxu0 0.0
    %515 = vmatpush1.msra.mxu0 0.0
    %516 = vmatprep.subr.mxu0 0.0
    %517 = vmatpush1.msra.mxu0 0.0
    %518 = vmatprep.subr.mxu0 0.0
    %519 = vmatpush1.msra.mxu0 0.0
    %520 = vmatprep.subr.mxu0 0.0
    %521 = vmatpush1.msra.mxu0 0.0
    %522 = vmatprep.subr.mxu0 0.0
    %523 = vmatpush1.msra.mxu0 0.0
    %524 = vmatprep.subr.mxu0 0.0
    %525 = vmatpush1.msra.mxu0 0.0
    %526 = vmatprep.subr.mxu0 0.0
    %527 = vmatpush1.msra.mxu0 0.0
    %528 = vmatprep.subr.mxu0 0.0
    %529 = vmatpush1.msra.mxu0 0.0
    %530 = vmatprep.subr.mxu0 0.0
    %531 = vmatpush1.msra.mxu0 0.0
    %532 = vmatprep.subr.mxu0 0.0
    %533 = vmatpush1.msra.mxu0 0.0
    %534 = vmatprep.subr.mxu0 0.0
    %535 = vmatpush1.msra.mxu0 0.0
    %536 = vmatprep.subr.mxu0 0.0
    %537 = vmatpush1.msra.mxu0 0.0
    %538 = vmatprep.subr.mxu0 0.0
    %539 = vmatpush1.msra.mxu0 0.0
    %540 = vmatprep.subr.mxu0 0.0
    %541 = vmatpush1.msra.mxu0 0.0
    %542 = vmatprep.mubr.f32.mxu0 0.0
    %543 = vmatmul.mubr.f32.gmra.mrb[0].mxu0 %v476
    %v544 = vpop.f32.mrb[0].mxu0
    %v545 = vadd.f32 0.0, %v544
    %v546 = vpop.f32.mrb[0].mxu0
    %547 = vdwg.mxu0
    %v549 = vrot.slane %v545, 6
    %v551 = vadd.f32 %v262, %v549
    %v552 = vxor.u32 %v551, 2147483648
    %v553 = vmul.f32 %v552, 1.442695
    %v554 = vpow.pop %v553
    %v555 = vadd.f32 %v554, 1.0
    %v556 = vrcp.pop %v555
    %v557 = vmul.f32 1.0, %v556
    %v558 = vmul.f32 %v557, 2.0
    %v559 = vsub.f32 %v558, 1.0
    %v561 = vrot.slane %v465, 7
    %v563 = vmul.f32 %v557, %v561
    %565 = vrot.lane.b32.xlu0 %v559, 64
    %v566 = vpop.permute.xlu0 %565
    %v568 = vmul.f32 %v557, %v566
    %570 = vrot.lane.b32.xlu0 %v568, 32
    %v571 = vpop.permute.xlu0 %570
    %v573 = vadd.f32 %v563, %v571
    %v574 = vtanh.pop %v573
    %576 = vrot.lane.b32.xlu0 %v574, 64
    %v577 = vpop.permute.xlu0 %576
    %v579 = vmul.f32 %v557, %v577
    %v581 = vrot.slane %v579, 2
    %582 = vrot.lane.b32.xlu0 %v581, 32
    %v583 = vpop.permute.xlu0 %582
    %v584 = vsel %vm265, %v583, 0
    %586 = vmatprep.subr.mxu0 0.0
    %587 = vmatpush1.msra.mxu0 %v54
    %588 = vmatprep.subr.mxu0 0.0
    %589 = vmatpush1.msra.mxu0 %v55
    %590 = vmatprep.subr.mxu0 0.0
    %591 = vmatpush1.msra.mxu0 %v56
    %592 = vmatprep.subr.mxu0 0.0
    %593 = vmatpush1.msra.mxu0 %v57
    %594 = vmatprep.subr.mxu0 0.0
    %595 = vmatpush1.msra.mxu0 0.0
    %596 = vmatprep.subr.mxu0 0.0
    %597 = vmatpush1.msra.mxu0 0.0
    %598 = vmatprep.subr.mxu0 0.0
    %599 = vmatpush1.msra.mxu0 0.0
    %600 = vmatprep.subr.mxu0 0.0
    %601 = vmatpush1.msra.mxu0 0.0
    %602 = vmatprep.subr.mxu0 0.0
    %603 = vmatpush1.msra.mxu0 0.0
    %604 = vmatprep.subr.mxu0 0.0
    %605 = vmatpush1.msra.mxu0 0.0
    %606 = vmatprep.subr.mxu0 0.0
    %607 = vmatpush1.msra.mxu0 0.0
    %608 = vmatprep.subr.mxu0 0.0
    %609 = vmatpush1.msra.mxu0 0.0
    %610 = vmatprep.subr.mxu0 0.0
    %611 = vmatpush1.msra.mxu0 0.0
    %612 = vmatprep.subr.mxu0 0.0
    %613 = vmatpush1.msra.mxu0 0.0
    %614 = vmatprep.subr.mxu0 0.0
    %615 = vmatpush1.msra.mxu0 0.0
    %616 = vmatprep.subr.mxu0 0.0
    %617 = vmatpush1.msra.mxu0 0.0
    %618 = vmatprep.subr.mxu0 0.0
    %619 = vmatpush1.msra.mxu0 0.0
    %620 = vmatprep.subr.mxu0 0.0
    %621 = vmatpush1.msra.mxu0 0.0
    %622 = vmatprep.subr.mxu0 0.0
    %623 = vmatpush1.msra.mxu0 0.0
    %624 = vmatprep.subr.mxu0 0.0
    %625 = vmatpush1.msra.mxu0 0.0
    %626 = vmatprep.subr.mxu0 0.0
    %627 = vmatpush1.msra.mxu0 0.0
    %628 = vmatprep.subr.mxu0 0.0
    %629 = vmatpush1.msra.mxu0 0.0
    %630 = vmatprep.subr.mxu0 0.0
    %631 = vmatpush1.msra.mxu0 0.0
    %632 = vmatprep.subr.mxu0 0.0
    %633 = vmatpush1.msra.mxu0 0.0
    %634 = vmatprep.subr.mxu0 0.0
    %635 = vmatpush1.msra.mxu0 0.0
    %636 = vmatprep.subr.mxu0 0.0
    %637 = vmatpush1.msra.mxu0 0.0
    %638 = vmatprep.subr.mxu0 0.0
    %639 = vmatpush1.msra.mxu0 0.0
    %640 = vmatprep.subr.mxu0 0.0
    %641 = vmatpush1.msra.mxu0 0.0
    %642 = vmatprep.subr.mxu0 0.0
    %643 = vmatpush1.msra.mxu0 0.0
    %644 = vmatprep.subr.mxu0 0.0
    %645 = vmatpush1.msra.mxu0 0.0
    %646 = vmatprep.subr.mxu0 0.0
    %647 = vmatpush1.msra.mxu0 0.0
    %648 = vmatprep.subr.mxu0 0.0
    %649 = vmatpush1.msra.mxu0 0.0
    %650 = vmatprep.mubr.f32.mxu0 0.0
    %651 = vmatmul.mubr.f32.gmra.mrb[0].mxu0 %v584
    %v652 = vpop.f32.mrb[0].mxu0
    %v653 = vadd.f32 0.0, %v652
    %v654 = vpop.f32.mrb[0].mxu0
    %655 = vdwg.mxu0
    %v657 = vrot.slane %v653, 5
    %v659 = vadd.f32 %v262, %v657
    %v660 = vxor.u32 %v659, 2147483648
    %v661 = vmul.f32 %v660, 1.442695
    %v662 = vpow.pop %v661
    %v663 = vadd.f32 %v662, 1.0
    %v664 = vrcp.pop %v663
    %v665 = vmul.f32 1.0, %v664
    %v666 = vmul.f32 %v665, 2.0
    %v667 = vsub.f32 %v666, 1.0
    %v669 = vrot.slane %v573, 7
    %v671 = vmul.f32 %v665, %v669
    %673 = vrot.lane.b32.xlu0 %v667, 64
    %v674 = vpop.permute.xlu0 %673
    %v676 = vmul.f32 %v665, %v674
    %678 = vrot.lane.b32.xlu0 %v676, 32
    %v679 = vpop.permute.xlu0 %678
    %v681 = vadd.f32 %v671, %v679
    %v682 = vtanh.pop %v681
    %684 = vrot.lane.b32.xlu0 %v682, 64
    %v685 = vpop.permute.xlu0 %684
    %v687 = vmul.f32 %v665, %v685
    %v689 = vrot.slane %v687, 3
    %690 = vrot.lane.b32.xlu0 %v689, 32
    %v691 = vpop.permute.xlu0 %690
    %v692 = vsel %vm265, %v691, 0
    %694 = vmatprep.subr.mxu0 0.0
    %695 = vmatpush1.msra.mxu0 %v54
    %696 = vmatprep.subr.mxu0 0.0
    %697 = vmatpush1.msra.mxu0 %v55
    %698 = vmatprep.subr.mxu0 0.0
    %699 = vmatpush1.msra.mxu0 %v56
    %700 = vmatprep.subr.mxu0 0.0
    %701 = vmatpush1.msra.mxu0 %v57
    %702 = vmatprep.subr.mxu0 0.0
    %703 = vmatpush1.msra.mxu0 0.0
    %704 = vmatprep.subr.mxu0 0.0
    %705 = vmatpush1.msra.mxu0 0.0
    %706 = vmatprep.subr.mxu0 0.0
    %707 = vmatpush1.msra.mxu0 0.0
    %708 = vmatprep.subr.mxu0 0.0
    %709 = vmatpush1.msra.mxu0 0.0
    %710 = vmatprep.subr.mxu0 0.0
    %711 = vmatpush1.msra.mxu0 0.0
    %712 = vmatprep.subr.mxu0 0.0
    %713 = vmatpush1.msra.mxu0 0.0
    %714 = vmatprep.subr.mxu0 0.0
    %715 = vmatpush1.msra.mxu0 0.0
    %716 = vmatprep.subr.mxu0 0.0
    %717 = vmatpush1.msra.mxu0 0.0
    %718 = vmatprep.subr.mxu0 0.0
    %719 = vmatpush1.msra.mxu0 0.0
    %720 = vmatprep.subr.mxu0 0.0
    %721 = vmatpush1.msra.mxu0 0.0
    %722 = vmatprep.subr.mxu0 0.0
    %723 = vmatpush1.msra.mxu0 0.0
    %724 = vmatprep.subr.mxu0 0.0
    %725 = vmatpush1.msra.mxu0 0.0
    %726 = vmatprep.subr.mxu0 0.0
    %727 = vmatpush1.msra.mxu0 0.0
    %728 = vmatprep.subr.mxu0 0.0
    %729 = vmatpush1.msra.mxu0 0.0
    %730 = vmatprep.subr.mxu0 0.0
    %731 = vmatpush1.msra.mxu0 0.0
    %732 = vmatprep.subr.mxu0 0.0
    %733 = vmatpush1.msra.mxu0 0.0
    %734 = vmatprep.subr.mxu0 0.0
    %735 = vmatpush1.msra.mxu0 0.0
    %736 = vmatprep.subr.mxu0 0.0
    %737 = vmatpush1.msra.mxu0 0.0
    %738 = vmatprep.subr.mxu0 0.0
    %739 = vmatpush1.msra.mxu0 0.0
    %740 = vmatprep.subr.mxu0 0.0
    %741 = vmatpush1.msra.mxu0 0.0
    %742 = vmatprep.subr.mxu0 0.0
    %743 = vmatpush1.msra.mxu0 0.0
    %744 = vmatprep.subr.mxu0 0.0
    %745 = vmatpush1.msra.mxu0 0.0
    %746 = vmatprep.subr.mxu0 0.0
    %747 = vmatpush1.msra.mxu0 0.0
    %748 = vmatprep.subr.mxu0 0.0
    %749 = vmatpush1.msra.mxu0 0.0
    %750 = vmatprep.subr.mxu0 0.0
    %751 = vmatpush1.msra.mxu0 0.0
    %752 = vmatprep.subr.mxu0 0.0
    %753 = vmatpush1.msra.mxu0 0.0
    %754 = vmatprep.subr.mxu0 0.0
    %755 = vmatpush1.msra.mxu0 0.0
    %756 = vmatprep.subr.mxu0 0.0
    %757 = vmatpush1.msra.mxu0 0.0
    %758 = vmatprep.mubr.f32.mxu0 0.0
    %759 = vmatmul.mubr.f32.gmra.mrb[0].mxu0 %v692
    %v760 = vpop.f32.mrb[0].mxu0
    %v761 = vadd.f32 0.0, %v760
    %v762 = vpop.f32.mrb[0].mxu0
    %763 = vdwg.mxu0
    %v765 = vrot.slane %v761, 4
    %v767 = vadd.f32 %v262, %v765
    %v768 = vxor.u32 %v767, 2147483648
    %v769 = vmul.f32 %v768, 1.442695
    %v770 = vpow.pop %v769
    %v771 = vadd.f32 %v770, 1.0
    %v772 = vrcp.pop %v771
    %v773 = vmul.f32 1.0, %v772
    %v774 = vmul.f32 %v773, 2.0
    %v775 = vsub.f32 %v774, 1.0
    %v777 = vrot.slane %v681, 7
    %v779 = vmul.f32 %v773, %v777
    %781 = vrot.lane.b32.xlu0 %v775, 64
    %v782 = vpop.permute.xlu0 %781
    %v784 = vmul.f32 %v773, %v782
    %786 = vrot.lane.b32.xlu0 %v784, 32
    %v787 = vpop.permute.xlu0 %786
    %v789 = vadd.f32 %v779, %v787
    %v790 = vtanh.pop %v789
    %792 = vrot.lane.b32.xlu0 %v790, 64
    %v793 = vpop.permute.xlu0 %792
    %v795 = vmul.f32 %v773, %v793
    %v797 = vrot.slane %v795, 4
    %798 = vrot.lane.b32.xlu0 %v797, 32
    %v799 = vpop.permute.xlu0 %798
    %v800 = vsel %vm265, %v799, 0
    %802 = vmatprep.subr.mxu0 0.0
    %803 = vmatpush1.msra.mxu0 %v54
    %804 = vmatprep.subr.mxu0 0.0
    %805 = vmatpush1.msra.mxu0 %v55
    %806 = vmatprep.subr.mxu0 0.0
    %807 = vmatpush1.msra.mxu0 %v56
    %808 = vmatprep.subr.mxu0 0.0
    %809 = vmatpush1.msra.mxu0 %v57
    %810 = vmatprep.subr.mxu0 0.0
    %811 = vmatpush1.msra.mxu0 0.0
    %812 = vmatprep.subr.mxu0 0.0
    %813 = vmatpush1.msra.mxu0 0.0
    %814 = vmatprep.subr.mxu0 0.0
    %815 = vmatpush1.msra.mxu0 0.0
    %816 = vmatprep.subr.mxu0 0.0
    %817 = vmatpush1.msra.mxu0 0.0
    %818 = vmatprep.subr.mxu0 0.0
    %819 = vmatpush1.msra.mxu0 0.0
    %820 = vmatprep.subr.mxu0 0.0
    %821 = vmatpush1.msra.mxu0 0.0
    %822 = vmatprep.subr.mxu0 0.0
    %823 = vmatpush1.msra.mxu0 0.0
    %824 = vmatprep.subr.mxu0 0.0
    %825 = vmatpush1.msra.mxu0 0.0
    %826 = vmatprep.subr.mxu0 0.0
    %827 = vmatpush1.msra.mxu0 0.0
    %828 = vmatprep.subr.mxu0 0.0
    %829 = vmatpush1.msra.mxu0 0.0
    %830 = vmatprep.subr.mxu0 0.0
    %831 = vmatpush1.msra.mxu0 0.0
    %832 = vmatprep.subr.mxu0 0.0
    %833 = vmatpush1.msra.mxu0 0.0
    %834 = vmatprep.subr.mxu0 0.0
    %835 = vmatpush1.msra.mxu0 0.0
    %836 = vmatprep.subr.mxu0 0.0
    %837 = vmatpush1.msra.mxu0 0.0
    %838 = vmatprep.subr.mxu0 0.0
    %839 = vmatpush1.msra.mxu0 0.0
    %840 = vmatprep.subr.mxu0 0.0
    %841 = vmatpush1.msra.mxu0 0.0
    %842 = vmatprep.subr.mxu0 0.0
    %843 = vmatpush1.msra.mxu0 0.0
    %844 = vmatprep.subr.mxu0 0.0
    %845 = vmatpush1.msra.mxu0 0.0
    %846 = vmatprep.subr.mxu0 0.0
    %847 = vmatpush1.msra.mxu0 0.0
    %848 = vmatprep.subr.mxu0 0.0
    %849 = vmatpush1.msra.mxu0 0.0
    %850 = vmatprep.subr.mxu0 0.0
    %851 = vmatpush1.msra.mxu0 0.0
    %852 = vmatprep.subr.mxu0 0.0
    %853 = vmatpush1.msra.mxu0 0.0
    %854 = vmatprep.subr.mxu0 0.0
    %855 = vmatpush1.msra.mxu0 0.0
    %856 = vmatprep.subr.mxu0 0.0
    %857 = vmatpush1.msra.mxu0 0.0
    %858 = vmatprep.subr.mxu0 0.0
    %859 = vmatpush1.msra.mxu0 0.0
    %860 = vmatprep.subr.mxu0 0.0
    %861 = vmatpush1.msra.mxu0 0.0
    %862 = vmatprep.subr.mxu0 0.0
    %863 = vmatpush1.msra.mxu0 0.0
    %864 = vmatprep.subr.mxu0 0.0
    %865 = vmatpush1.msra.mxu0 0.0
    %866 = vmatprep.mubr.f32.mxu0 0.0
    %867 = vmatmul.mubr.f32.gmra.mrb[0].mxu0 %v800
    %v868 = vpop.f32.mrb[0].mxu0
    %v869 = vadd.f32 0.0, %v868
    %v870 = vpop.f32.mrb[0].mxu0
    %871 = vdwg.mxu0
    %v873 = vrot.slane %v869, 3
    %v875 = vadd.f32 %v262, %v873
    %v876 = vxor.u32 %v875, 2147483648
    %v877 = vmul.f32 %v876, 1.442695
    %v878 = vpow.pop %v877
    %v879 = vadd.f32 %v878, 1.0
    %v880 = vrcp.pop %v879
    %v881 = vmul.f32 1.0, %v880
    %v882 = vmul.f32 %v881, 2.0
    %v883 = vsub.f32 %v882, 1.0
    %v885 = vrot.slane %v789, 7
    %v887 = vmul.f32 %v881, %v885
    %889 = vrot.lane.b32.xlu0 %v883, 64
    %v890 = vpop.permute.xlu0 %889
    %v892 = vmul.f32 %v881, %v890
    %894 = vrot.lane.b32.xlu0 %v892, 32
    %v895 = vpop.permute.xlu0 %894
    %v897 = vadd.f32 %v887, %v895
    %v898 = vtanh.pop %v897
    %900 = vrot.lane.b32.xlu0 %v898, 64
    %v901 = vpop.permute.xlu0 %900
    %v903 = vmul.f32 %v881, %v901
    %v905 = vrot.slane %v903, 5
    %906 = vrot.lane.b32.xlu0 %v905, 32
    %v907 = vpop.permute.xlu0 %906
    %v908 = vsel %vm265, %v907, 0
    %910 = vmatprep.subr.mxu0 0.0
    %911 = vmatpush1.msra.mxu0 %v54
    %912 = vmatprep.subr.mxu0 0.0
    %913 = vmatpush1.msra.mxu0 %v55
    %914 = vmatprep.subr.mxu0 0.0
    %915 = vmatpush1.msra.mxu0 %v56
    %916 = vmatprep.subr.mxu0 0.0
    %917 = vmatpush1.msra.mxu0 %v57
    %918 = vmatprep.subr.mxu0 0.0
    %919 = vmatpush1.msra.mxu0 0.0
    %920 = vmatprep.subr.mxu0 0.0
    %921 = vmatpush1.msra.mxu0 0.0
    %922 = vmatprep.subr.mxu0 0.0
    %923 = vmatpush1.msra.mxu0 0.0
    %924 = vmatprep.subr.mxu0 0.0
    %925 = vmatpush1.msra.mxu0 0.0
    %926 = vmatprep.subr.mxu0 0.0
    %927 = vmatpush1.msra.mxu0 0.0
    %928 = vmatprep.subr.mxu0 0.0
    %929 = vmatpush1.msra.mxu0 0.0
    %930 = vmatprep.subr.mxu0 0.0
    %931 = vmatpush1.msra.mxu0 0.0
    %932 = vmatprep.subr.mxu0 0.0
    %933 = vmatpush1.msra.mxu0 0.0
    %934 = vmatprep.subr.mxu0 0.0
    %935 = vmatpush1.msra.mxu0 0.0
    %936 = vmatprep.subr.mxu0 0.0
    %937 = vmatpush1.msra.mxu0 0.0
    %938 = vmatprep.subr.mxu0 0.0
    %939 = vmatpush1.msra.mxu0 0.0
    %940 = vmatprep.subr.mxu0 0.0
    %941 = vmatpush1.msra.mxu0 0.0
    %942 = vmatprep.subr.mxu0 0.0
    %943 = vmatpush1.msra.mxu0 0.0
    %944 = vmatprep.subr.mxu0 0.0
    %945 = vmatpush1.msra.mxu0 0.0
    %946 = vmatprep.subr.mxu0 0.0
    %947 = vmatpush1.msra.mxu0 0.0
    %948 = vmatprep.subr.mxu0 0.0
    %949 = vmatpush1.msra.mxu0 0.0
    %950 = vmatprep.subr.mxu0 0.0
    %951 = vmatpush1.msra.mxu0 0.0
    %952 = vmatprep.subr.mxu0 0.0
    %953 = vmatpush1.msra.mxu0 0.0
    %954 = vmatprep.subr.mxu0 0.0
    %955 = vmatpush1.msra.mxu0 0.0
    %956 = vmatprep.subr.mxu0 0.0
    %957 = vmatpush1.msra.mxu0 0.0
    %958 = vmatprep.subr.mxu0 0.0
    %959 = vmatpush1.msra.mxu0 0.0
    %960 = vmatprep.subr.mxu0 0.0
    %961 = vmatpush1.msra.mxu0 0.0
    %962 = vmatprep.subr.mxu0 0.0
    %963 = vmatpush1.msra.mxu0 0.0
    %964 = vmatprep.subr.mxu0 0.0
    %965 = vmatpush1.msra.mxu0 0.0
    %966 = vmatprep.subr.mxu0 0.0
    %967 = vmatpush1.msra.mxu0 0.0
    %968 = vmatprep.subr.mxu0 0.0
    %969 = vmatpush1.msra.mxu0 0.0
    %970 = vmatprep.subr.mxu0 0.0
    %971 = vmatpush1.msra.mxu0 0.0
    %972 = vmatprep.subr.mxu0 0.0
    %973 = vmatpush1.msra.mxu0 0.0
    %974 = vmatprep.mubr.f32.mxu0 0.0
    %975 = vmatmul.mubr.f32.gmra.mrb[0].mxu0 %v908
    %v976 = vpop.f32.mrb[0].mxu0
    %v977 = vadd.f32 0.0, %v976
    %v978 = vpop.f32.mrb[0].mxu0
    %979 = vdwg.mxu0
    %v981 = vrot.slane %v977, 2
    %v983 = vadd.f32 %v262, %v981
    %v984 = vxor.u32 %v983, 2147483648
    %v985 = vmul.f32 %v984, 1.442695
    %v986 = vpow.pop %v985
    %v987 = vadd.f32 %v986, 1.0
    %v988 = vrcp.pop %v987
    %v989 = vmul.f32 1.0, %v988
    %v990 = vmul.f32 %v989, 2.0
    %v991 = vsub.f32 %v990, 1.0
    %v993 = vrot.slane %v897, 7
    %v995 = vmul.f32 %v989, %v993
    %997 = vrot.lane.b32.xlu0 %v991, 64
    %v998 = vpop.permute.xlu0 %997
    %v1000 = vmul.f32 %v989, %v998
    %1002 = vrot.lane.b32.xlu0 %v1000, 32
    %v1003 = vpop.permute.xlu0 %1002
    %v1005 = vadd.f32 %v995, %v1003
    %v1006 = vtanh.pop %v1005
    %1008 = vrot.lane.b32.xlu0 %v1006, 64
    %v1009 = vpop.permute.xlu0 %1008
    %v1011 = vmul.f32 %v989, %v1009
    %v1013 = vrot.slane %v1011, 6
    %1014 = vrot.lane.b32.xlu0 %v1013, 32
    %v1015 = vpop.permute.xlu0 %1014
    %v1016 = vsel %vm265, %v1015, 0
    %1018 = vmatprep.subr.mxu0 0.0
    %1019 = vmatpush1.msra.mxu0 %v54
    %1020 = vmatprep.subr.mxu0 0.0
    %1021 = vmatpush1.msra.mxu0 %v55
    %1022 = vmatprep.subr.mxu0 0.0
    %1023 = vmatpush1.msra.mxu0 %v56
    %1024 = vmatprep.subr.mxu0 0.0
    %1025 = vmatpush1.msra.mxu0 %v57
    %1026 = vmatprep.subr.mxu0 0.0
    %1027 = vmatpush1.msra.mxu0 0.0
    %1028 = vmatprep.subr.mxu0 0.0
    %1029 = vmatpush1.msra.mxu0 0.0
    %1030 = vmatprep.subr.mxu0 0.0
    %1031 = vmatpush1.msra.mxu0 0.0
    %1032 = vmatprep.subr.mxu0 0.0
    %1033 = vmatpush1.msra.mxu0 0.0
    %1034 = vmatprep.subr.mxu0 0.0
    %1035 = vmatpush1.msra.mxu0 0.0
    %1036 = vmatprep.subr.mxu0 0.0
    %1037 = vmatpush1.msra.mxu0 0.0
    %1038 = vmatprep.subr.mxu0 0.0
    %1039 = vmatpush1.msra.mxu0 0.0
    %1040 = vmatprep.subr.mxu0 0.0
    %1041 = vmatpush1.msra.mxu0 0.0
    %1042 = vmatprep.subr.mxu0 0.0
    %1043 = vmatpush1.msra.mxu0 0.0
    %1044 = vmatprep.subr.mxu0 0.0
    %1045 = vmatpush1.msra.mxu0 0.0
    %1046 = vmatprep.subr.mxu0 0.0
    %1047 = vmatpush1.msra.mxu0 0.0
    %1048 = vmatprep.subr.mxu0 0.0
    %1049 = vmatpush1.msra.mxu0 0.0
    %1050 = vmatprep.subr.mxu0 0.0
    %1051 = vmatpush1.msra.mxu0 0.0
    %1052 = vmatprep.subr.mxu0 0.0
    %1053 = vmatpush1.msra.mxu0 0.0
    %1054 = vmatprep.subr.mxu0 0.0
    %1055 = vmatpush1.msra.mxu0 0.0
    %1056 = vmatprep.subr.mxu0 0.0
    %1057 = vmatpush1.msra.mxu0 0.0
    %1058 = vmatprep.subr.mxu0 0.0
    %1059 = vmatpush1.msra.mxu0 0.0
    %1060 = vmatprep.subr.mxu0 0.0
    %1061 = vmatpush1.msra.mxu0 0.0
    %1062 = vmatprep.subr.mxu0 0.0
    %1063 = vmatpush1.msra.mxu0 0.0
    %1064 = vmatprep.subr.mxu0 0.0
    %1065 = vmatpush1.msra.mxu0 0.0
    %1066 = vmatprep.subr.mxu0 0.0
    %1067 = vmatpush1.msra.mxu0 0.0
    %1068 = vmatprep.subr.mxu0 0.0
    %1069 = vmatpush1.msra.mxu0 0.0
    %1070 = vmatprep.subr.mxu0 0.0
    %1071 = vmatpush1.msra.mxu0 0.0
    %1072 = vmatprep.subr.mxu0 0.0
    %1073 = vmatpush1.msra.mxu0 0.0
    %1074 = vmatprep.subr.mxu0 0.0
    %1075 = vmatpush1.msra.mxu0 0.0
    %1076 = vmatprep.subr.mxu0 0.0
    %1077 = vmatpush1.msra.mxu0 0.0
    %1078 = vmatprep.subr.mxu0 0.0
    %1079 = vmatpush1.msra.mxu0 0.0
    %1080 = vmatprep.subr.mxu0 0.0
    %1081 = vmatpush1.msra.mxu0 0.0
    %1082 = vmatprep.mubr.f32.mxu0 0.0
    %1083 = vmatmul.mubr.f32.gmra.mrb[0].mxu0 %v1016
    %v1084 = vpop.f32.mrb[0].mxu0
    %v1085 = vadd.f32 0.0, %v1084
    %v1086 = vpop.f32.mrb[0].mxu0
    %1087 = vdwg.mxu0
    %v1089 = vrot.slane %v1085, 1
    %v1091 = vadd.f32 %v262, %v1089
    %v1092 = vxor.u32 %v1091, 2147483648
    %v1093 = vmul.f32 %v1092, 1.442695
    %v1094 = vpow.pop %v1093
    %v1095 = vadd.f32 %v1094, 1.0
    %v1096 = vrcp.pop %v1095
    %v1097 = vmul.f32 1.0, %v1096
    %v1098 = vmul.f32 %v1097, 2.0
    %v1099 = vsub.f32 %v1098, 1.0
    %v1101 = vrot.slane %v1005, 7
    %v1103 = vmul.f32 %v1097, %v1101
    %1105 = vrot.lane.b32.xlu0 %v1099, 64
    %v1106 = vpop.permute.xlu0 %1105
    %v1108 = vmul.f32 %v1097, %v1106
    %1110 = vrot.lane.b32.xlu0 %v1108, 32
    %v1111 = vpop.permute.xlu0 %1110
    %v1113 = vadd.f32 %v1103, %v1111
    %v1114 = vtanh.pop %v1113
    %1116 = vrot.lane.b32.xlu0 %v1114, 64
    %v1117 = vpop.permute.xlu0 %1116
    %v1119 = vmul.f32 %v1097, %v1117
    %vm1120 = vcmask 1040384
    %v1121 = vsel %vm1120, %v364, %v471
    %vm1122 = vcmask 1041408
    %v1123 = vsel %vm1122, %v1121, %v579
    %vm1124 = vcmask 1042432
    %v1125 = vsel %vm1124, %v1123, %v687
    %vm1126 = vcmask 1043456
    %v1127 = vsel %vm1126, %v1125, %v795
    %vm1128 = vcmask 1044480
    %v1129 = vsel %vm1128, %v1127, %v903
    %vm1130 = vcmask 1045504
    %v1131 = vsel %vm1130, %v1129, %v1011
    %vm1132 = vcmask 1046528
    %v1133 = vsel %vm1132, %v1131, %v1119
    %v1134 = vlaneseq
    %v1135 = vshrl.u32 %v1134, 7
    %v1136 = vsub.s32 0, %v1135
    %v1137 = vrot.slane %v61, %v1136
    %1139 = vrot.lane.b32.xlu0 %v1133, 32
    %v1140 = vpop.permute.xlu0 %1139
    %v1141 = vsel %vm265, %v1140, 0
    %1143 = vmatprep.subr.mxu0 0.0
    %1144 = vmatpush1.msra.mxu0 %v62
    %1145 = vmatprep.subr.mxu0 0.0
    %1146 = vmatpush1.msra.mxu0 %v63
    %1147 = vmatprep.subr.mxu0 0.0
    %1148 = vmatpush1.msra.mxu0 %v64
    %1149 = vmatprep.subr.mxu0 0.0
    %1150 = vmatpush1.msra.mxu0 %v65
    %1151 = vmatprep.subr.mxu0 0.0
    %1152 = vmatpush1.msra.mxu0 0.0
    %1153 = vmatprep.subr.mxu0 0.0
    %1154 = vmatpush1.msra.mxu0 0.0
    %1155 = vmatprep.subr.mxu0 0.0
    %1156 = vmatpush1.msra.mxu0 0.0
    %1157 = vmatprep.subr.mxu0 0.0
    %1158 = vmatpush1.msra.mxu0 0.0
    %1159 = vmatprep.subr.mxu0 0.0
    %1160 = vmatpush1.msra.mxu0 0.0
    %1161 = vmatprep.subr.mxu0 0.0
    %1162 = vmatpush1.msra.mxu0 0.0
    %1163 = vmatprep.subr.mxu0 0.0
    %1164 = vmatpush1.msra.mxu0 0.0
    %1165 = vmatprep.subr.mxu0 0.0
    %1166 = vmatpush1.msra.mxu0 0.0
    %1167 = vmatprep.subr.mxu0 0.0
    %1168 = vmatpush1.msra.mxu0 0.0
    %1169 = vmatprep.subr.mxu0 0.0
    %1170 = vmatpush1.msra.mxu0 0.0
    %1171 = vmatprep.subr.mxu0 0.0
    %1172 = vmatpush1.msra.mxu0 0.0
    %1173 = vmatprep.subr.mxu0 0.0
    %1174 = vmatpush1.msra.mxu0 0.0
    %1175 = vmatprep.subr.mxu0 0.0
    %1176 = vmatpush1.msra.mxu0 0.0
    %1177 = vmatprep.subr.mxu0 0.0
    %1178 = vmatpush1.msra.mxu0 0.0
    %1179 = vmatprep.subr.mxu0 0.0
    %1180 = vmatpush1.msra.mxu0 0.0
    %1181 = vmatprep.subr.mxu0 0.0
    %1182 = vmatpush1.msra.mxu0 0.0
    %1183 = vmatprep.subr.mxu0 0.0
    %1184 = vmatpush1.msra.mxu0 0.0
    %1185 = vmatprep.subr.mxu0 0.0
    %1186 = vmatpush1.msra.mxu0 0.0
    %1187 = vmatprep.subr.mxu0 0.0
    %1188 = vmatpush1.msra.mxu0 0.0
    %1189 = vmatprep.subr.mxu0 0.0
    %1190 = vmatpush1.msra.mxu0 0.0
    %1191 = vmatprep.subr.mxu0 0.0
    %1192 = vmatpush1.msra.mxu0 0.0
    %1193 = vmatprep.subr.mxu0 0.0
    %1194 = vmatpush1.msra.mxu0 0.0
    %1195 = vmatprep.subr.mxu0 0.0
    %1196 = vmatpush1.msra.mxu0 0.0
    %1197 = vmatprep.subr.mxu0 0.0
    %1198 = vmatpush1.msra.mxu0 0.0
    %1199 = vmatprep.subr.mxu0 0.0
    %1200 = vmatpush1.msra.mxu0 0.0
    %1201 = vmatprep.subr.mxu0 0.0
    %1202 = vmatpush1.msra.mxu0 0.0
    %1203 = vmatprep.subr.mxu0 0.0
    %1204 = vmatpush1.msra.mxu0 0.0
    %1205 = vmatprep.subr.mxu0 0.0
    %1206 = vmatpush1.msra.mxu0 0.0
    %1207 = vmatprep.mubr.f32.mxu0 0.0
    %1208 = vmatmul.mubr.f32.gmra.mrb[0].mxu0 %v1141
    %v1209 = vpop.f32.mrb[0].mxu0
    %v1210 = vadd.f32 %v1137, %v1209
    %v1211 = vpop.f32.mrb[0].mxu0
    %1212 = vdwg.mxu0
    %1213 = vst [vmem:[#allocation7] sm:$0xff] %v1210
    // Predicated region
    $region18: #{tpu_custom_call.1} parent=1 // pred_check
      _
    $region19: #{tpu_custom_call.1} parent=1 // pred_check_branch
      %1215 = sbr.rel (0) target = $region21
    $region20: #{tpu_custom_call.1} parent=1 // pred_region
      %s1217 = ssub.s32 128, 128
      %1218 = vsyncadd [#allocation4], %s1217
      %s1220 = sshll.u32 [#allocation7], 4
      %s1221 = int_to_ptr.vmem [resolvable:$true] %s1220
      %1223 = dma.vmem_to_hbm [thread:$0]  %s1221, 128, %s2, [#allocation4]
    $region21: #{tpu_custom_call.1} parent=1 // pred_fallthru
      _
    // Predicated region
    $region22: #{tpu_custom_call.1} parent=1 // pred_check
      _
    $region23: #{tpu_custom_call.1} parent=1 // pred_check_branch
      %1225 = sbr.rel (0) target = $region25
    $region24: #{tpu_custom_call.1} parent=1 // pred_region
      %1226 = dma.done [#allocation4], 128
    $region25: #{tpu_custom_call.1} parent=1 // pred_fallthru
      _
    %1227 = vsyncpa [#allocation3], 1
    %1228 = vsyncpa [#allocation6], 1
    %1229 = vsyncpa [#allocation4], 1

</llo_original>
